<compile_context>
chip_gen: v7x
topology: tpu7x:2x2x1
jax: 0.10.0
libtpu: 0.0.40
codegen_flags: <defaults>
</compile_context>

<pallas_src>
import functools

import jax
import jax.numpy as jnp
from jax import lax
from jax.experimental import pallas as pl
from jax.experimental.pallas import tpu as pltpu


def _mha_kernel(x_ref, wqkv_t_ref, bqkv_ref, wout_t_ref, bout_ref, o_ref,
                qkv_sc, ctx_sc, *, num_heads, head_dim, q_tile, compute_dtype):
    Bt, S, D = x_ref.shape
    H, Dh = num_heads, head_dim
    n_q = S // q_tile

    # ---- QKV projection on a dense (Bt*S, D) slab (tall MXU M, dense store) ----
    x2 = x_ref[...].reshape(Bt * S, D).astype(compute_dtype)
    qkv = jnp.dot(x2, wqkv_t_ref[...], preferred_element_type=jnp.float32)
    qkv = qkv + bqkv_ref[...]                                   # (Bt*S, 3D) f32
    qkv_sc[...] = qkv.astype(qkv_sc.dtype)

    # ---- attention: loop over (batch row, head), lane-aligned 2-D slices ----
    def batch_body(b, carry):
        row0 = pl.multiple_of(b * S, S)
        for h in range(H):                       # static -> static lane slices
            c0 = h * Dh
            k = qkv_sc[pl.ds(row0, S), D + c0:D + c0 + Dh]           # (S, Dh)
            v = qkv_sc[pl.ds(row0, S), 2 * D + c0:2 * D + c0 + Dh]   # (S, Dh)

            def q_body(t, inner, k=k, v=v, c0=c0, row0=row0):
                qrow = pl.multiple_of(row0 + t * q_tile, q_tile)
                q = qkv_sc[pl.ds(qrow, q_tile), c0:c0 + Dh]          # (tq, Dh)
                # scores = q @ k^T (contract last dims; no materialized transpose).
                # NOTE: no 1/sqrt(Dh) scaling -- reference bug preserved.
                s = lax.dot_general(q, k, (((1,), (1,)), ((), ())),
                                    preferred_element_type=jnp.float32)
                # Numerically stable softmax over the kv axis, kept in f32.
                s = s - jnp.max(s, axis=-1, keepdims=True)
                e = jnp.exp(s)
                attn = e * pl.reciprocal(jnp.sum(e, axis=-1, keepdims=True),
                                         approx=True)
                ctx = jnp.dot(attn.astype(compute_dtype), v,
                              preferred_element_type=jnp.float32)    # (tq, Dh)
                # Natural (h*Dh + dh) feature order; the buggy dh*H + h flatten
                # is folded into the output-weight column permutation.
                ctx_sc[pl.ds(qrow, q_tile), c0:c0 + Dh] = ctx.astype(ctx_sc.dtype)
                return inner

            lax.fori_loop(0, n_q, q_body, 0, unroll=n_q <= 2)
        return carry

    lax.fori_loop(0, Bt, batch_body, 0, unroll=Bt <= 4)

    # ---- output projection (weight already column-permuted + K-major) ----
    out = jnp.dot(ctx_sc[...], wout_t_ref[...], preferred_element_type=jnp.float32)
    out = out + bout_ref[...]                                    # (Bt*S, D) f32
    o_ref[...] = out.reshape(Bt, S, D).astype(o_ref.dtype)


def _default_vmem_limit_bytes():
    cap = 128 * 1024 * 1024
    try:
        info = pltpu.get_tpu_info()
        cap = int(getattr(info, "vmem_capacity_bytes", cap)) or cap
    except Exception:
        pass
    # ~25% headroom for compiler scratch / double buffers:
    # v5e/v6e (128 MiB) -> 96 MiB, v7x (64 MiB) -> 48 MiB.
    return min((cap * 3) // 4, 100 * 1024 * 1024)


def multi_head_attention(x, w_qkv, b_qkv, w_out, b_out, *, num_heads,
                         block_b=None, compute_dtype=jnp.bfloat16,
                         vmem_limit_bytes=None):
    """Forward pass of the (buggy) MultiHeadAttention module.

    compute_dtype: dtype of MXU operands (weights / activations / attn probs).
    Default bf16 for throughput; accumulation, biases and softmax stay f32.
    Pass jnp.float32 for a bit-tighter numeric match against an f32 reference.
    """
    B, S, D = x.shape
    assert D % num_heads == 0, "dim must be divisible by num_heads"
    H = num_heads
    Dh = D // H

    # ---- Wrapper-side layout plumbing (one-time XLA ops, outside the kernel) ----
    # 1) K-major weights so the kernel never transposes them.
    # 2) Fold the buggy permute(0,2,3,1) flatten (feature index dh*H + h) into a
    #    static column permutation of the output weight:
    #      w_out_perm[:, h*Dh + dh] = w_out[:, dh*H + h]
    perm = jnp.arange(D).reshape(Dh, H).T.reshape(-1)        # perm[h*Dh+dh] = dh*H+h
    w_qkv_t = jnp.asarray(w_qkv, compute_dtype).T            # (D, 3D)
    w_out_t = jnp.asarray(jnp.asarray(w_out)[:, perm], compute_dtype).T  # (D, D)
    b_qkv2 = jnp.asarray(b_qkv, jnp.float32).reshape(1, 3 * D)
    b_out2 = jnp.asarray(b_out, jnp.float32).reshape(1, D)

    # Halve activation DMA bytes when computing in bf16 (most valuable on v5e).
    x_in = x.astype(jnp.bfloat16) if compute_dtype == jnp.bfloat16 else x

    if vmem_limit_bytes is None:
        vmem_limit_bytes = _default_vmem_limit_bytes()

    # ~512 rows/step to amortize grid overhead and give the MXU a tall M, but
    # keep >=2 grid steps when B > 1 so v7x's second TensorCore isn't idle.
    if block_b is None:
        block_b = max(1, min(B, 512 // max(S, 1)))
        if B > 1:
            block_b = min(block_b, B // 2)
    block_b = max(1, min(block_b, B))
    while B % block_b:
        block_b -= 1

    # q-row tiling caps the score tile at q_tile*S*4 bytes for long sequences.
    q_tile = S
    if S > 512:
        for cand in (512, 256, 128):
            if S % cand == 0:
                q_tile = cand
                break

    kernel = functools.partial(_mha_kernel, num_heads=H, head_dim=Dh,
                               q_tile=q_tile, compute_dtype=compute_dtype)

    def _call(single_buffer_weights):
        # Constant-index weight/bias blocks: request a single buffer so they
        # don't pay 2x VMEM for pointless double-buffering.
        const = ({"pipeline_mode": pl.Buffered(1)} if single_buffer_weights else {})
        grid_spec = pltpu.PrefetchScalarGridSpec(
            num_scalar_prefetch=0,
            grid=(B // block_b,),
            in_specs=[
                pl.BlockSpec((block_b, S, D), lambda b: (b, 0, 0)),          # x block
                pl.BlockSpec((D, 3 * D), lambda b: (0, 0), **const),         # qkv W (K-major)
                pl.BlockSpec((1, 3 * D), lambda b: (0, 0), **const),         # qkv bias
                pl.BlockSpec((D, D), lambda b: (0, 0), **const),             # out W (perm, K-major)
                pl.BlockSpec((1, D), lambda b: (0, 0), **const),             # out bias
            ],
            out_specs=pl.BlockSpec((block_b, S, D), lambda b: (b, 0, 0)),
            scratch_shapes=[
                pltpu.VMEM((block_b * S, 3 * D), compute_dtype),   # qkv slab
                pltpu.VMEM((block_b * S, D), compute_dtype),       # ctx slab
            ],
        )
        return pl.pallas_call(
            kernel,
            out_shape=jax.ShapeDtypeStruct((B, S, D), x.dtype),
            grid_spec=grid_spec,
            compiler_params=pltpu.CompilerParams(
                dimension_semantics=("parallel",),
                vmem_limit_bytes=vmem_limit_bytes),
        )(x_in, w_qkv_t, b_qkv2, w_out_t, b_out2)

    try:
        return _call(True)
    except Exception:
        # Fallback for JAX builds that reject pipeline_mode=pl.Buffered(1).
        return _call(False)


def _reference(x, w_qkv, b_qkv, w_out, b_out, num_heads):
    """Pure-JAX f32 mirror of the PyTorch forward (bugs included)."""
    B, S, D = x.shape
    Dh = D // num_heads
    qkv = x @ w_qkv.T + b_qkv                                   # (B, S, 3D)
    qkv = qkv.reshape(B, S, 3, num_heads, Dh).transpose(2, 0, 3, 1, 4)
    q, k, v = qkv[0], qkv[1], qkv[2]                            # (B, H, S, Dh)
    scores = q @ jnp.swapaxes(k, -2, -1)                        # no scaling (bug)
    attn = jax.nn.softmax(scores, axis=-1)
    ctx = attn @ v                                              # (B, H, S, Dh)
    ctx = jnp.transpose(ctx, (0, 2, 3, 1)).reshape(B, S, -1)    # buggy permute
    return ctx @ w_out.T + b_out


if __name__ == "__main__":
    B, S, D, H = 2, 8, 32, 4

    key = jax.random.PRNGKey(0)
    kx, kw1, kb1, kw2, kb2 = jax.random.split(key, 5)

    x = jax.random.normal(kx, (B, S, D), dtype=jnp.float32)
    w_qkv = jax.random.normal(kw1, (3 * D, D), dtype=jnp.float32) * 0.05
    b_qkv = jax.random.normal(kb1, (3 * D,), dtype=jnp.float32) * 0.05
    w_out = jax.random.normal(kw2, (D, D), dtype=jnp.float32) * 0.05
    b_out = jax.random.normal(kb2, (D,), dtype=jnp.float32) * 0.05

    ref = _reference(x, w_qkv, b_qkv, w_out, b_out, H)

    # f32 MXU operands: tight check against the f32 reference.
    out_f32 = multi_head_attention(x, w_qkv, b_qkv, w_out, b_out,
                                   num_heads=H, compute_dtype=jnp.float32)
    out_f32 = jax.block_until_ready(out_f32)
    assert out_f32.shape == (B, S, D)
    assert jnp.allclose(out_f32, ref, rtol=1e-3, atol=1e-3), "f32 mismatch vs reference"

    # Default bf16 MXU operands (f32 accumulation / softmax): production path.
    out_bf16 = multi_head_attention(x, w_qkv, b_qkv, w_out, b_out, num_heads=H)
    out_bf16 = jax.block_until_ready(out_bf16)
    assert out_bf16.shape == (B, S, D)
    assert jnp.allclose(out_bf16, ref, rtol=2e-2, atol=2e-2), "bf16 mismatch vs reference"

    print("KERNEL_OK")
</pallas_src>

<mosaic_0001>
module attributes {stable_mosaic.version = 11 : i64} {
  func.func @_mha_kernel(%arg0: i32, %arg1: memref<1x8x32xf32, #tpu.memory_space<vmem>>, %arg2: memref<32x96xf32, #tpu.memory_space<vmem>>, %arg3: memref<1x96xf32, #tpu.memory_space<vmem>>, %arg4: memref<32x32xf32, #tpu.memory_space<vmem>>, %arg5: memref<1x32xf32, #tpu.memory_space<vmem>>, %arg6: memref<1x8x32xf32, #tpu.memory_space<vmem>>, %arg7: memref<8x96xf32, #tpu.memory_space<vmem>>, %arg8: memref<8x32xf32, #tpu.memory_space<vmem>>) attributes {dimension_semantics = [#tpu.dimension_semantics<parallel>], iteration_bounds = array<i64: 2>, scalar_prefetch = 0 : i64, scratch_operands = 2 : i64, tpu.core_type = #tpu.core_type<tc>, window_params = [{transform_indices = @transform_0, window_bounds = array<i64: 1, 8, 32>}, {pipeline_mode = #tpu.pipeline_mode<synchronous>, transform_indices = @transform_1, window_bounds = array<i64: 32, 96>}, {pipeline_mode = #tpu.pipeline_mode<synchronous>, transform_indices = @transform_2, window_bounds = array<i64: 1, 96>}, {pipeline_mode = #tpu.pipeline_mode<synchronous>, transform_indices = @transform_3, window_bounds = array<i64: 32, 32>}, {pipeline_mode = #tpu.pipeline_mode<synchronous>, transform_indices = @transform_4, window_bounds = array<i64: 1, 32>}, {transform_indices = @transform_5, window_bounds = array<i64: 1, 8, 32>}]} {
    %c0 = arith.constant 0 : index
    %c0_0 = arith.constant 0 : index
    %c0_1 = arith.constant 0 : index
    %0 = vector.load %arg1[%c0, %c0_0, %c0_1] : memref<1x8x32xf32, #tpu.memory_space<vmem>>, vector<1x8x32xf32>
    %1 = vector.shape_cast %0 : vector<1x8x32xf32> to vector<8x32xf32>
    %c0_2 = arith.constant 0 : index
    %c0_3 = arith.constant 0 : index
    %2 = vector.load %arg2[%c0_2, %c0_3] : memref<32x96xf32, #tpu.memory_space<vmem>>, vector<32x96xf32>
    %cst = arith.constant dense<0.000000e+00> : vector<8x96xf32>
    %3 = tpu.matmul %1, %2, %cst {dimension_numbers = #tpu.dot_dimension_numbers<[1], [0], [0], [1], [0, 0, 1, 1], [], []>} : vector<8x32xf32>, vector<32x96xf32>, vector<8x96xf32> -> vector<8x96xf32>
    %c0_4 = arith.constant 0 : index
    %c0_5 = arith.constant 0 : index
    %4 = vector.load %arg3[%c0_4, %c0_5] : memref<1x96xf32, #tpu.memory_space<vmem>>, vector<1x96xf32>
    %5 = vector.broadcast %4 : vector<1x96xf32> to vector<8x96xf32>
    %6 = arith.addf %3, %5 : vector<8x96xf32>
    %c0_6 = arith.constant 0 : index
    %c0_7 = arith.constant 0 : index
    %7 = vector.load %arg7[%c0_6, %c0_7] : memref<8x96xf32, #tpu.memory_space<vmem>>, vector<8x96xf32>
    tpu.vector_store %arg7[%c0_6, %c0_7], %6 {strides = array<i32>} : memref<8x96xf32, #tpu.memory_space<vmem>>, vector<8x96xf32>,
    %c0_i32 = arith.constant 0 : i32
    %c8_i32 = arith.constant 8 : i32
    %8 = arith.muli %c0_i32, %c8_i32 : i32
    %9 = tpu.assume_multiple %8, 8 : i32
    %10 = arith.index_cast %9 : i32 to index
    %c32 = arith.constant 32 : index
    %11 = vector.load %arg7[%10, %c32] : memref<8x96xf32, #tpu.memory_space<vmem>>, vector<8x8xf32>
    %12 = arith.index_cast %9 : i32 to index
    %c64 = arith.constant 64 : index
    %13 = vector.load %arg7[%12, %c64] : memref<8x96xf32, #tpu.memory_space<vmem>>, vector<8x8xf32>
    %c0_i32_8 = arith.constant 0 : i32
    %c8_i32_9 = arith.constant 8 : i32
    %14 = arith.muli %c0_i32_8, %c8_i32_9 : i32
    %15 = arith.addi %9, %14 : i32
    %16 = tpu.assume_multiple %15, 8 : i32
    %17 = arith.index_cast %16 : i32 to index
    %c0_10 = arith.constant 0 : index
    %18 = vector.load %arg7[%17, %c0_10] : memref<8x96xf32, #tpu.memory_space<vmem>>, vector<8x8xf32>
    %cst_11 = arith.constant dense<0.000000e+00> : vector<8x8xf32>
    %19 = tpu.matmul %18, %11, %cst_11 {dimension_numbers = #tpu.dot_dimension_numbers<[1], [1], [0], [0], [0, 0, 1, 0], [], []>} : vector<8x8xf32>, vector<8x8xf32>, vector<8x8xf32> -> vector<8x8xf32>
    %cst_12 = arith.constant dense<0xFF800000> : vector<8xf32>
    %20 = vector.multi_reduction <maximumf>, %19, %cst_12 [1] : vector<8x8xf32> to vector<8xf32>
    %21 = vector.shape_cast %20 : vector<8xf32> to vector<8x1xf32>
    %22 = vector.broadcast %21 : vector<8x1xf32> to vector<8x8xf32>
    %23 = arith.subf %19, %22 : vector<8x8xf32>
    %24 = math.exp %23 : vector<8x8xf32>
    %cst_13 = arith.constant dense<0.000000e+00> : vector<8xf32>
    %25 = vector.multi_reduction <add>, %24, %cst_13 [1] : vector<8x8xf32> to vector<8xf32>
    %26 = vector.shape_cast %25 : vector<8xf32> to vector<8x1xf32>
    %27 = tpu.reciprocal %26 {approx = true} : vector<8x1xf32> -> vector<8x1xf32>
    %28 = vector.broadcast %27 : vector<8x1xf32> to vector<8x8xf32>
    %29 = arith.mulf %24, %28 : vector<8x8xf32>
    %cst_14 = arith.constant dense<0.000000e+00> : vector<8x8xf32>
    %30 = tpu.matmul %29, %13, %cst_14 {dimension_numbers = #tpu.dot_dimension_numbers<[1], [0], [0], [1], [0, 0, 1, 1], [], []>} : vector<8x8xf32>, vector<8x8xf32>, vector<8x8xf32> -> vector<8x8xf32>
    %31 = arith.index_cast %16 : i32 to index
    %c0_15 = arith.constant 0 : index
    %32 = vector.load %arg8[%31, %c0_15] : memref<8x32xf32, #tpu.memory_space<vmem>>, vector<8x8xf32>
    tpu.vector_store %arg8[%31, %c0_15], %30 {strides = array<i32>} : memref<8x32xf32, #tpu.memory_space<vmem>>, vector<8x8xf32>,
    %c1_i32 = arith.constant 1 : i32
    %33 = arith.index_cast %9 : i32 to index
    %c40 = arith.constant 40 : index
    %34 = vector.load %arg7[%33, %c40] : memref<8x96xf32, #tpu.memory_space<vmem>>, vector<8x8xf32>
    %35 = arith.index_cast %9 : i32 to index
    %c72 = arith.constant 72 : index
    %36 = vector.load %arg7[%35, %c72] : memref<8x96xf32, #tpu.memory_space<vmem>>, vector<8x8xf32>
    %c0_i32_16 = arith.constant 0 : i32
    %c8_i32_17 = arith.constant 8 : i32
    %37 = arith.muli %c0_i32_16, %c8_i32_17 : i32
    %38 = arith.addi %9, %37 : i32
    %39 = tpu.assume_multiple %38, 8 : i32
    %40 = arith.index_cast %39 : i32 to index
    %c8 = arith.constant 8 : index
    %41 = vector.load %arg7[%40, %c8] : memref<8x96xf32, #tpu.memory_space<vmem>>, vector<8x8xf32>
    %cst_18 = arith.constant dense<0.000000e+00> : vector<8x8xf32>
    %42 = tpu.matmul %41, %34, %cst_18 {dimension_numbers = #tpu.dot_dimension_numbers<[1], [1], [0], [0], [0, 0, 1, 0], [], []>} : vector<8x8xf32>, vector<8x8xf32>, vector<8x8xf32> -> vector<8x8xf32>
    %cst_19 = arith.constant dense<0xFF800000> : vector<8xf32>
    %43 = vector.multi_reduction <maximumf>, %42, %cst_19 [1] : vector<8x8xf32> to vector<8xf32>
    %44 = vector.shape_cast %43 : vector<8xf32> to vector<8x1xf32>
    %45 = vector.broadcast %44 : vector<8x1xf32> to vector<8x8xf32>
    %46 = arith.subf %42, %45 : vector<8x8xf32>
    %47 = math.exp %46 : vector<8x8xf32>
    %cst_20 = arith.constant dense<0.000000e+00> : vector<8xf32>
    %48 = vector.multi_reduction <add>, %47, %cst_20 [1] : vector<8x8xf32> to vector<8xf32>
    %49 = vector.shape_cast %48 : vector<8xf32> to vector<8x1xf32>
    %50 = tpu.reciprocal %49 {approx = true} : vector<8x1xf32> -> vector<8x1xf32>
    %51 = vector.broadcast %50 : vector<8x1xf32> to vector<8x8xf32>
    %52 = arith.mulf %47, %51 : vector<8x8xf32>
    %cst_21 = arith.constant dense<0.000000e+00> : vector<8x8xf32>
    %53 = tpu.matmul %52, %36, %cst_21 {dimension_numbers = #tpu.dot_dimension_numbers<[1], [0], [0], [1], [0, 0, 1, 1], [], []>} : vector<8x8xf32>, vector<8x8xf32>, vector<8x8xf32> -> vector<8x8xf32>
    %54 = arith.index_cast %39 : i32 to index
    %c8_22 = arith.constant 8 : index
    %55 = vector.load %arg8[%54, %c8_22] : memref<8x32xf32, #tpu.memory_space<vmem>>, vector<8x8xf32>
    tpu.vector_store %arg8[%54, %c8_22], %53 {strides = array<i32>} : memref<8x32xf32, #tpu.memory_space<vmem>>, vector<8x8xf32>,
    %c1_i32_23 = arith.constant 1 : i32
    %56 = arith.index_cast %9 : i32 to index
    %c48 = arith.constant 48 : index
    %57 = vector.load %arg7[%56, %c48] : memref<8x96xf32, #tpu.memory_space<vmem>>, vector<8x8xf32>
    %58 = arith.index_cast %9 : i32 to index
    %c80 = arith.constant 80 : index
    %59 = vector.load %arg7[%58, %c80] : memref<8x96xf32, #tpu.memory_space<vmem>>, vector<8x8xf32>
    %c0_i32_24 = arith.constant 0 : i32
    %c8_i32_25 = arith.constant 8 : i32
    %60 = arith.muli %c0_i32_24, %c8_i32_25 : i32
    %61 = arith.addi %9, %60 : i32
    %62 = tpu.assume_multiple %61, 8 : i32
    %63 = arith.index_cast %62 : i32 to index
    %c16 = arith.constant 16 : index
    %64 = vector.load %arg7[%63, %c16] : memref<8x96xf32, #tpu.memory_space<vmem>>, vector<8x8xf32>
    %cst_26 = arith.constant dense<0.000000e+00> : vector<8x8xf32>
    %65 = tpu.matmul %64, %57, %cst_26 {dimension_numbers = #tpu.dot_dimension_numbers<[1], [1], [0], [0], [0, 0, 1, 0], [], []>} : vector<8x8xf32>, vector<8x8xf32>, vector<8x8xf32> -> vector<8x8xf32>
    %cst_27 = arith.constant dense<0xFF800000> : vector<8xf32>
    %66 = vector.multi_reduction <maximumf>, %65, %cst_27 [1] : vector<8x8xf32> to vector<8xf32>
    %67 = vector.shape_cast %66 : vector<8xf32> to vector<8x1xf32>
    %68 = vector.broadcast %67 : vector<8x1xf32> to vector<8x8xf32>
    %69 = arith.subf %65, %68 : vector<8x8xf32>
    %70 = math.exp %69 : vector<8x8xf32>
    %cst_28 = arith.constant dense<0.000000e+00> : vector<8xf32>
    %71 = vector.multi_reduction <add>, %70, %cst_28 [1] : vector<8x8xf32> to vector<8xf32>
    %72 = vector.shape_cast %71 : vector<8xf32> to vector<8x1xf32>
    %73 = tpu.reciprocal %72 {approx = true} : vector<8x1xf32> -> vector<8x1xf32>
    %74 = vector.broadcast %73 : vector<8x1xf32> to vector<8x8xf32>
    %75 = arith.mulf %70, %74 : vector<8x8xf32>
    %cst_29 = arith.constant dense<0.000000e+00> : vector<8x8xf32>
    %76 = tpu.matmul %75, %59, %cst_29 {dimension_numbers = #tpu.dot_dimension_numbers<[1], [0], [0], [1], [0, 0, 1, 1], [], []>} : vector<8x8xf32>, vector<8x8xf32>, vector<8x8xf32> -> vector<8x8xf32>
    %77 = arith.index_cast %62 : i32 to index
    %c16_30 = arith.constant 16 : index
    %78 = vector.load %arg8[%77, %c16_30] : memref<8x32xf32, #tpu.memory_space<vmem>>, vector<8x8xf32>
    tpu.vector_store %arg8[%77, %c16_30], %76 {strides = array<i32>} : memref<8x32xf32, #tpu.memory_space<vmem>>, vector<8x8xf32>,
    %c1_i32_31 = arith.constant 1 : i32
    %79 = arith.index_cast %9 : i32 to index
    %c56 = arith.constant 56 : index
    %80 = vector.load %arg7[%79, %c56] : memref<8x96xf32, #tpu.memory_space<vmem>>, vector<8x8xf32>
    %81 = arith.index_cast %9 : i32 to index
    %c88 = arith.constant 88 : index
    %82 = vector.load %arg7[%81, %c88] : memref<8x96xf32, #tpu.memory_space<vmem>>, vector<8x8xf32>
    %c0_i32_32 = arith.constant 0 : i32
    %c8_i32_33 = arith.constant 8 : i32
    %83 = arith.muli %c0_i32_32, %c8_i32_33 : i32
    %84 = arith.addi %9, %83 : i32
    %85 = tpu.assume_multiple %84, 8 : i32
    %86 = arith.index_cast %85 : i32 to index
    %c24 = arith.constant 24 : index
    %87 = vector.load %arg7[%86, %c24] : memref<8x96xf32, #tpu.memory_space<vmem>>, vector<8x8xf32>
    %cst_34 = arith.constant dense<0.000000e+00> : vector<8x8xf32>
    %88 = tpu.matmul %87, %80, %cst_34 {dimension_numbers = #tpu.dot_dimension_numbers<[1], [1], [0], [0], [0, 0, 1, 0], [], []>} : vector<8x8xf32>, vector<8x8xf32>, vector<8x8xf32> -> vector<8x8xf32>
    %cst_35 = arith.constant dense<0xFF800000> : vector<8xf32>
    %89 = vector.multi_reduction <maximumf>, %88, %cst_35 [1] : vector<8x8xf32> to vector<8xf32>
    %90 = vector.shape_cast %89 : vector<8xf32> to vector<8x1xf32>
    %91 = vector.broadcast %90 : vector<8x1xf32> to vector<8x8xf32>
    %92 = arith.subf %88, %91 : vector<8x8xf32>
    %93 = math.exp %92 : vector<8x8xf32>
    %cst_36 = arith.constant dense<0.000000e+00> : vector<8xf32>
    %94 = vector.multi_reduction <add>, %93, %cst_36 [1] : vector<8x8xf32> to vector<8xf32>
    %95 = vector.shape_cast %94 : vector<8xf32> to vector<8x1xf32>
    %96 = tpu.reciprocal %95 {approx = true} : vector<8x1xf32> -> vector<8x1xf32>
    %97 = vector.broadcast %96 : vector<8x1xf32> to vector<8x8xf32>
    %98 = arith.mulf %93, %97 : vector<8x8xf32>
    %cst_37 = arith.constant dense<0.000000e+00> : vector<8x8xf32>
    %99 = tpu.matmul %98, %82, %cst_37 {dimension_numbers = #tpu.dot_dimension_numbers<[1], [0], [0], [1], [0, 0, 1, 1], [], []>} : vector<8x8xf32>, vector<8x8xf32>, vector<8x8xf32> -> vector<8x8xf32>
    %100 = arith.index_cast %85 : i32 to index
    %c24_38 = arith.constant 24 : index
    %101 = vector.load %arg8[%100, %c24_38] : memref<8x32xf32, #tpu.memory_space<vmem>>, vector<8x8xf32>
    tpu.vector_store %arg8[%100, %c24_38], %99 {strides = array<i32>} : memref<8x32xf32, #tpu.memory_space<vmem>>, vector<8x8xf32>,
    %c1_i32_39 = arith.constant 1 : i32
    %c1_i32_40 = arith.constant 1 : i32
    %c0_41 = arith.constant 0 : index
    %c0_42 = arith.constant 0 : index
    %102 = vector.load %arg8[%c0_41, %c0_42] : memref<8x32xf32, #tpu.memory_space<vmem>>, vector<8x32xf32>
    %c0_43 = arith.constant 0 : index
    %c0_44 = arith.constant 0 : index
    %103 = vector.load %arg4[%c0_43, %c0_44] : memref<32x32xf32, #tpu.memory_space<vmem>>, vector<32x32xf32>
    %cst_45 = arith.constant dense<0.000000e+00> : vector<8x32xf32>
    %104 = tpu.matmul %102, %103, %cst_45 {dimension_numbers = #tpu.dot_dimension_numbers<[1], [0], [0], [1], [0, 0, 1, 1], [], []>} : vector<8x32xf32>, vector<32x32xf32>, vector<8x32xf32> -> vector<8x32xf32>
    %c0_46 = arith.constant 0 : index
    %c0_47 = arith.constant 0 : index
    %105 = vector.load %arg5[%c0_46, %c0_47] : memref<1x32xf32, #tpu.memory_space<vmem>>, vector<1x32xf32>
    %106 = vector.broadcast %105 : vector<1x32xf32> to vector<8x32xf32>
    %107 = arith.addf %104, %106 : vector<8x32xf32>
    %108 = vector.shape_cast %107 : vector<8x32xf32> to vector<1x8x32xf32>
    %c0_48 = arith.constant 0 : index
    %c0_49 = arith.constant 0 : index
    %c0_50 = arith.constant 0 : index
    %109 = vector.load %arg6[%c0_48, %c0_49, %c0_50] : memref<1x8x32xf32, #tpu.memory_space<vmem>>, vector<1x8x32xf32>
    tpu.vector_store %arg6[%c0_48, %c0_49, %c0_50], %108 {strides = array<i32>} : memref<1x8x32xf32, #tpu.memory_space<vmem>>, vector<1x8x32xf32>,
    return
  }
  func.func @transform_0(%arg0: i32) -> (i32, i32, i32) {
    %c0_i32 = arith.constant 0 : i32
    %c0_i32_0 = arith.constant 0 : i32
    %c0_i32_1 = arith.constant 0 : i32
    return %arg0, %c0_i32, %c0_i32_0 : i32, i32, i32
  }
  func.func @transform_1(%arg0: i32) -> (i32, i32) {
    %c0_i32 = arith.constant 0 : i32
    %c0_i32_0 = arith.constant 0 : i32
    %c0_i32_1 = arith.constant 0 : i32
    return %c0_i32, %c0_i32_0 : i32, i32
  }
  func.func @transform_2(%arg0: i32) -> (i32, i32) {
    %c0_i32 = arith.constant 0 : i32
    %c0_i32_0 = arith.constant 0 : i32
    %c0_i32_1 = arith.constant 0 : i32
    return %c0_i32, %c0_i32_0 : i32, i32
  }
  func.func @transform_3(%arg0: i32) -> (i32, i32) {
    %c0_i32 = arith.constant 0 : i32
    %c0_i32_0 = arith.constant 0 : i32
    %c0_i32_1 = arith.constant 0 : i32
    return %c0_i32, %c0_i32_0 : i32, i32
  }
  func.func @transform_4(%arg0: i32) -> (i32, i32) {
    %c0_i32 = arith.constant 0 : i32
    %c0_i32_0 = arith.constant 0 : i32
    %c0_i32_1 = arith.constant 0 : i32
    return %c0_i32, %c0_i32_0 : i32, i32
  }
  func.func @transform_5(%arg0: i32) -> (i32, i32, i32) {
    %c0_i32 = arith.constant 0 : i32
    %c0_i32_0 = arith.constant 0 : i32
    %c0_i32_1 = arith.constant 0 : i32
    return %arg0, %c0_i32, %c0_i32_0 : i32, i32, i32
  }
}

module attributes {stable_mosaic.version = 11 : i64} {
  func.func @_mha_kernel(%arg0: i32, %arg1: memref<1x8x32xf32, #tpu.memory_space<vmem>>, %arg2: memref<32x96xf32, #tpu.memory_space<vmem>>, %arg3: memref<1x96xf32, #tpu.memory_space<vmem>>, %arg4: memref<32x32xf32, #tpu.memory_space<vmem>>, %arg5: memref<1x32xf32, #tpu.memory_space<vmem>>, %arg6: memref<1x8x32xf32, #tpu.memory_space<vmem>>, %arg7: memref<8x96xf32, #tpu.memory_space<vmem>>, %arg8: memref<8x32xf32, #tpu.memory_space<vmem>>) attributes {dimension_semantics = [#tpu.dimension_semantics<parallel>], iteration_bounds = array<i64: 2>, scalar_prefetch = 0 : i64, scratch_operands = 2 : i64, tpu.core_type = #tpu.core_type<tc>, window_params = [{transform_indices = @transform_0, window_bounds = array<i64: 1, 8, 32>}, {pipeline_mode = #tpu.pipeline_mode<synchronous>, transform_indices = @transform_1, window_bounds = array<i64: 32, 96>}, {pipeline_mode = #tpu.pipeline_mode<synchronous>, transform_indices = @transform_2, window_bounds = array<i64: 1, 96>}, {pipeline_mode = #tpu.pipeline_mode<synchronous>, transform_indices = @transform_3, window_bounds = array<i64: 32, 32>}, {pipeline_mode = #tpu.pipeline_mode<synchronous>, transform_indices = @transform_4, window_bounds = array<i64: 1, 32>}, {transform_indices = @transform_5, window_bounds = array<i64: 1, 8, 32>}]} {
    %c0 = arith.constant 0 : index
    %c0_0 = arith.constant 0 : index
    %c0_1 = arith.constant 0 : index
    %0 = vector.load %arg1[%c0, %c0_0, %c0_1] : memref<1x8x32xf32, #tpu.memory_space<vmem>>, vector<1x8x32xf32>
    %1 = vector.shape_cast %0 : vector<1x8x32xf32> to vector<8x32xf32>
    %c0_2 = arith.constant 0 : index
    %c0_3 = arith.constant 0 : index
    %2 = vector.load %arg2[%c0_2, %c0_3] : memref<32x96xf32, #tpu.memory_space<vmem>>, vector<32x96xf32>
    %cst = arith.constant dense<0.000000e+00> : vector<8x96xf32>
    %3 = tpu.matmul %1, %2, %cst {dimension_numbers = #tpu.dot_dimension_numbers<[1], [0], [0], [1], [0, 0, 1, 1], [], []>} : vector<8x32xf32>, vector<32x96xf32>, vector<8x96xf32> -> vector<8x96xf32>
    %c0_4 = arith.constant 0 : index
    %c0_5 = arith.constant 0 : index
    %4 = vector.load %arg3[%c0_4, %c0_5] : memref<1x96xf32, #tpu.memory_space<vmem>>, vector<1x96xf32>
    %5 = vector.broadcast %4 : vector<1x96xf32> to vector<8x96xf32>
    %6 = arith.addf %3, %5 : vector<8x96xf32>
    %c0_6 = arith.constant 0 : index
    %c0_7 = arith.constant 0 : index
    %7 = vector.load %arg7[%c0_6, %c0_7] : memref<8x96xf32, #tpu.memory_space<vmem>>, vector<8x96xf32>
    tpu.vector_store %arg7[%c0_6, %c0_7], %6 {strides = array<i32>} : memref<8x96xf32, #tpu.memory_space<vmem>>, vector<8x96xf32>,
    %c0_i32 = arith.constant 0 : i32
    %c8_i32 = arith.constant 8 : i32
    %8 = arith.muli %c0_i32, %c8_i32 : i32
    %9 = tpu.assume_multiple %8, 8 : i32
    %10 = arith.index_cast %9 : i32 to index
    %c32 = arith.constant 32 : index
    %11 = vector.load %arg7[%10, %c32] : memref<8x96xf32, #tpu.memory_space<vmem>>, vector<8x8xf32>
    %12 = arith.index_cast %9 : i32 to index
    %c64 = arith.constant 64 : index
    %13 = vector.load %arg7[%12, %c64] : memref<8x96xf32, #tpu.memory_space<vmem>>, vector<8x8xf32>
    %c0_i32_8 = arith.constant 0 : i32
    %c8_i32_9 = arith.constant 8 : i32
    %14 = arith.muli %c0_i32_8, %c8_i32_9 : i32
    %15 = arith.addi %9, %14 : i32
    %16 = tpu.assume_multiple %15, 8 : i32
    %17 = arith.index_cast %16 : i32 to index
    %c0_10 = arith.constant 0 : index
    %18 = vector.load %arg7[%17, %c0_10] : memref<8x96xf32, #tpu.memory_space<vmem>>, vector<8x8xf32>
    %cst_11 = arith.constant dense<0.000000e+00> : vector<8x8xf32>
    %19 = tpu.matmul %18, %11, %cst_11 {dimension_numbers = #tpu.dot_dimension_numbers<[1], [1], [0], [0], [0, 0, 1, 0], [], []>} : vector<8x8xf32>, vector<8x8xf32>, vector<8x8xf32> -> vector<8x8xf32>
    %cst_12 = arith.constant dense<0xFF800000> : vector<8xf32>
    %20 = vector.multi_reduction <maximumf>, %19, %cst_12 [1] : vector<8x8xf32> to vector<8xf32>
    %21 = vector.shape_cast %20 : vector<8xf32> to vector<8x1xf32>
    %22 = vector.broadcast %21 : vector<8x1xf32> to vector<8x8xf32>
    %23 = arith.subf %19, %22 : vector<8x8xf32>
    %24 = math.exp %23 : vector<8x8xf32>
    %cst_13 = arith.constant dense<0.000000e+00> : vector<8xf32>
    %25 = vector.multi_reduction <add>, %24, %cst_13 [1] : vector<8x8xf32> to vector<8xf32>
    %26 = vector.shape_cast %25 : vector<8xf32> to vector<8x1xf32>
    %27 = tpu.reciprocal %26 {approx = true} : vector<8x1xf32> -> vector<8x1xf32>
    %28 = vector.broadcast %27 : vector<8x1xf32> to vector<8x8xf32>
    %29 = arith.mulf %24, %28 : vector<8x8xf32>
    %cst_14 = arith.constant dense<0.000000e+00> : vector<8x8xf32>
    %30 = tpu.matmul %29, %13, %cst_14 {dimension_numbers = #tpu.dot_dimension_numbers<[1], [0], [0], [1], [0, 0, 1, 1], [], []>} : vector<8x8xf32>, vector<8x8xf32>, vector<8x8xf32> -> vector<8x8xf32>
    %31 = arith.index_cast %16 : i32 to index
    %c0_15 = arith.constant 0 : index
    %32 = vector.load %arg8[%31, %c0_15] : memref<8x32xf32, #tpu.memory_space<vmem>>, vector<8x8xf32>
    tpu.vector_store %arg8[%31, %c0_15], %30 {strides = array<i32>} : memref<8x32xf32, #tpu.memory_space<vmem>>, vector<8x8xf32>,
    %c1_i32 = arith.constant 1 : i32
    %33 = arith.index_cast %9 : i32 to index
    %c40 = arith.constant 40 : index
    %34 = vector.load %arg7[%33, %c40] : memref<8x96xf32, #tpu.memory_space<vmem>>, vector<8x8xf32>
    %35 = arith.index_cast %9 : i32 to index
    %c72 = arith.constant 72 : index
    %36 = vector.load %arg7[%35, %c72] : memref<8x96xf32, #tpu.memory_space<vmem>>, vector<8x8xf32>
    %c0_i32_16 = arith.constant 0 : i32
    %c8_i32_17 = arith.constant 8 : i32
    %37 = arith.muli %c0_i32_16, %c8_i32_17 : i32
    %38 = arith.addi %9, %37 : i32
    %39 = tpu.assume_multiple %38, 8 : i32
    %40 = arith.index_cast %39 : i32 to index
    %c8 = arith.constant 8 : index
    %41 = vector.load %arg7[%40, %c8] : memref<8x96xf32, #tpu.memory_space<vmem>>, vector<8x8xf32>
    %cst_18 = arith.constant dense<0.000000e+00> : vector<8x8xf32>
    %42 = tpu.matmul %41, %34, %cst_18 {dimension_numbers = #tpu.dot_dimension_numbers<[1], [1], [0], [0], [0, 0, 1, 0], [], []>} : vector<8x8xf32>, vector<8x8xf32>, vector<8x8xf32> -> vector<8x8xf32>
    %cst_19 = arith.constant dense<0xFF800000> : vector<8xf32>
    %43 = vector.multi_reduction <maximumf>, %42, %cst_19 [1] : vector<8x8xf32> to vector<8xf32>
    %44 = vector.shape_cast %43 : vector<8xf32> to vector<8x1xf32>
    %45 = vector.broadcast %44 : vector<8x1xf32> to vector<8x8xf32>
    %46 = arith.subf %42, %45 : vector<8x8xf32>
    %47 = math.exp %46 : vector<8x8xf32>
    %cst_20 = arith.constant dense<0.000000e+00> : vector<8xf32>
    %48 = vector.multi_reduction <add>, %47, %cst_20 [1] : vector<8x8xf32> to vector<8xf32>
    %49 = vector.shape_cast %48 : vector<8xf32> to vector<8x1xf32>
    %50 = tpu.reciprocal %49 {approx = true} : vector<8x1xf32> -> vector<8x1xf32>
    %51 = vector.broadcast %50 : vector<8x1xf32> to vector<8x8xf32>
    %52 = arith.mulf %47, %51 : vector<8x8xf32>
    %cst_21 = arith.constant dense<0.000000e+00> : vector<8x8xf32>
    %53 = tpu.matmul %52, %36, %cst_21 {dimension_numbers = #tpu.dot_dimension_numbers<[1], [0], [0], [1], [0, 0, 1, 1], [], []>} : vector<8x8xf32>, vector<8x8xf32>, vector<8x8xf32> -> vector<8x8xf32>
    %54 = arith.index_cast %39 : i32 to index
    %c8_22 = arith.constant 8 : index
    %55 = vector.load %arg8[%54, %c8_22] : memref<8x32xf32, #tpu.memory_space<vmem>>, vector<8x8xf32>
    tpu.vector_store %arg8[%54, %c8_22], %53 {strides = array<i32>} : memref<8x32xf32, #tpu.memory_space<vmem>>, vector<8x8xf32>,
    %c1_i32_23 = arith.constant 1 : i32
    %56 = arith.index_cast %9 : i32 to index
    %c48 = arith.constant 48 : index
    %57 = vector.load %arg7[%56, %c48] : memref<8x96xf32, #tpu.memory_space<vmem>>, vector<8x8xf32>
    %58 = arith.index_cast %9 : i32 to index
    %c80 = arith.constant 80 : index
    %59 = vector.load %arg7[%58, %c80] : memref<8x96xf32, #tpu.memory_space<vmem>>, vector<8x8xf32>
    %c0_i32_24 = arith.constant 0 : i32
    %c8_i32_25 = arith.constant 8 : i32
    %60 = arith.muli %c0_i32_24, %c8_i32_25 : i32
    %61 = arith.addi %9, %60 : i32
    %62 = tpu.assume_multiple %61, 8 : i32
    %63 = arith.index_cast %62 : i32 to index
    %c16 = arith.constant 16 : index
    %64 = vector.load %arg7[%63, %c16] : memref<8x96xf32, #tpu.memory_space<vmem>>, vector<8x8xf32>
    %cst_26 = arith.constant dense<0.000000e+00> : vector<8x8xf32>
    %65 = tpu.matmul %64, %57, %cst_26 {dimension_numbers = #tpu.dot_dimension_numbers<[1], [1], [0], [0], [0, 0, 1, 0], [], []>} : vector<8x8xf32>, vector<8x8xf32>, vector<8x8xf32> -> vector<8x8xf32>
    %cst_27 = arith.constant dense<0xFF800000> : vector<8xf32>
    %66 = vector.multi_reduction <maximumf>, %65, %cst_27 [1] : vector<8x8xf32> to vector<8xf32>
    %67 = vector.shape_cast %66 : vector<8xf32> to vector<8x1xf32>
    %68 = vector.broadcast %67 : vector<8x1xf32> to vector<8x8xf32>
    %69 = arith.subf %65, %68 : vector<8x8xf32>
    %70 = math.exp %69 : vector<8x8xf32>
    %cst_28 = arith.constant dense<0.000000e+00> : vector<8xf32>
    %71 = vector.multi_reduction <add>, %70, %cst_28 [1] : vector<8x8xf32> to vector<8xf32>
    %72 = vector.shape_cast %71 : vector<8xf32> to vector<8x1xf32>
    %73 = tpu.reciprocal %72 {approx = true} : vector<8x1xf32> -> vector<8x1xf32>
    %74 = vector.broadcast %73 : vector<8x1xf32> to vector<8x8xf32>
    %75 = arith.mulf %70, %74 : vector<8x8xf32>
    %cst_29 = arith.constant dense<0.000000e+00> : vector<8x8xf32>
    %76 = tpu.matmul %75, %59, %cst_29 {dimension_numbers = #tpu.dot_dimension_numbers<[1], [0], [0], [1], [0, 0, 1, 1], [], []>} : vector<8x8xf32>, vector<8x8xf32>, vector<8x8xf32> -> vector<8x8xf32>
    %77 = arith.index_cast %62 : i32 to index
    %c16_30 = arith.constant 16 : index
    %78 = vector.load %arg8[%77, %c16_30] : memref<8x32xf32, #tpu.memory_space<vmem>>, vector<8x8xf32>
    tpu.vector_store %arg8[%77, %c16_30], %76 {strides = array<i32>} : memref<8x32xf32, #tpu.memory_space<vmem>>, vector<8x8xf32>,
    %c1_i32_31 = arith.constant 1 : i32
    %79 = arith.index_cast %9 : i32 to index
    %c56 = arith.constant 56 : index
    %80 = vector.load %arg7[%79, %c56] : memref<8x96xf32, #tpu.memory_space<vmem>>, vector<8x8xf32>
    %81 = arith.index_cast %9 : i32 to index
    %c88 = arith.constant 88 : index
    %82 = vector.load %arg7[%81, %c88] : memref<8x96xf32, #tpu.memory_space<vmem>>, vector<8x8xf32>
    %c0_i32_32 = arith.constant 0 : i32
    %c8_i32_33 = arith.constant 8 : i32
    %83 = arith.muli %c0_i32_32, %c8_i32_33 : i32
    %84 = arith.addi %9, %83 : i32
    %85 = tpu.assume_multiple %84, 8 : i32
    %86 = arith.index_cast %85 : i32 to index
    %c24 = arith.constant 24 : index
    %87 = vector.load %arg7[%86, %c24] : memref<8x96xf32, #tpu.memory_space<vmem>>, vector<8x8xf32>
    %cst_34 = arith.constant dense<0.000000e+00> : vector<8x8xf32>
    %88 = tpu.matmul %87, %80, %cst_34 {dimension_numbers = #tpu.dot_dimension_numbers<[1], [1], [0], [0], [0, 0, 1, 0], [], []>} : vector<8x8xf32>, vector<8x8xf32>, vector<8x8xf32> -> vector<8x8xf32>
    %cst_35 = arith.constant dense<0xFF800000> : vector<8xf32>
    %89 = vector.multi_reduction <maximumf>, %88, %cst_35 [1] : vector<8x8xf32> to vector<8xf32>
    %90 = vector.shape_cast %89 : vector<8xf32> to vector<8x1xf32>
    %91 = vector.broadcast %90 : vector<8x1xf32> to vector<8x8xf32>
    %92 = arith.subf %88, %91 : vector<8x8xf32>
    %93 = math.exp %92 : vector<8x8xf32>
    %cst_36 = arith.constant dense<0.000000e+00> : vector<8xf32>
    %94 = vector.multi_reduction <add>, %93, %cst_36 [1] : vector<8x8xf32> to vector<8xf32>
    %95 = vector.shape_cast %94 : vector<8xf32> to vector<8x1xf32>
    %96 = tpu.reciprocal %95 {approx = true} : vector<8x1xf32> -> vector<8x1xf32>
    %97 = vector.broadcast %96 : vector<8x1xf32> to vector<8x8xf32>
    %98 = arith.mulf %93, %97 : vector<8x8xf32>
    %cst_37 = arith.constant dense<0.000000e+00> : vector<8x8xf32>
    %99 = tpu.matmul %98, %82, %cst_37 {dimension_numbers = #tpu.dot_dimension_numbers<[1], [0], [0], [1], [0, 0, 1, 1], [], []>} : vector<8x8xf32>, vector<8x8xf32>, vector<8x8xf32> -> vector<8x8xf32>
    %100 = arith.index_cast %85 : i32 to index
    %c24_38 = arith.constant 24 : index
    %101 = vector.load %arg8[%100, %c24_38] : memref<8x32xf32, #tpu.memory_space<vmem>>, vector<8x8xf32>
    tpu.vector_store %arg8[%100, %c24_38], %99 {strides = array<i32>} : memref<8x32xf32, #tpu.memory_space<vmem>>, vector<8x8xf32>,
    %c1_i32_39 = arith.constant 1 : i32
    %c1_i32_40 = arith.constant 1 : i32
    %c0_41 = arith.constant 0 : index
    %c0_42 = arith.constant 0 : index
    %102 = vector.load %arg8[%c0_41, %c0_42] : memref<8x32xf32, #tpu.memory_space<vmem>>, vector<8x32xf32>
    %c0_43 = arith.constant 0 : index
    %c0_44 = arith.constant 0 : index
    %103 = vector.load %arg4[%c0_43, %c0_44] : memref<32x32xf32, #tpu.memory_space<vmem>>, vector<32x32xf32>
    %cst_45 = arith.constant dense<0.000000e+00> : vector<8x32xf32>
    %104 = tpu.matmul %102, %103, %cst_45 {dimension_numbers = #tpu.dot_dimension_numbers<[1], [0], [0], [1], [0, 0, 1, 1], [], []>} : vector<8x32xf32>, vector<32x32xf32>, vector<8x32xf32> -> vector<8x32xf32>
    %c0_46 = arith.constant 0 : index
    %c0_47 = arith.constant 0 : index
    %105 = vector.load %arg5[%c0_46, %c0_47] : memref<1x32xf32, #tpu.memory_space<vmem>>, vector<1x32xf32>
    %106 = vector.broadcast %105 : vector<1x32xf32> to vector<8x32xf32>
    %107 = arith.addf %104, %106 : vector<8x32xf32>
    %108 = vector.shape_cast %107 : vector<8x32xf32> to vector<1x8x32xf32>
    %c0_48 = arith.constant 0 : index
    %c0_49 = arith.constant 0 : index
    %c0_50 = arith.constant 0 : index
    %109 = vector.load %arg6[%c0_48, %c0_49, %c0_50] : memref<1x8x32xf32, #tpu.memory_space<vmem>>, vector<1x8x32xf32>
    tpu.vector_store %arg6[%c0_48, %c0_49, %c0_50], %108 {strides = array<i32>} : memref<1x8x32xf32, #tpu.memory_space<vmem>>, vector<1x8x32xf32>,
    return
  }
  func.func @transform_0(%arg0: i32) -> (i32, i32, i32) {
    %c0_i32 = arith.constant 0 : i32
    %c0_i32_0 = arith.constant 0 : i32
    %c0_i32_1 = arith.constant 0 : i32
    return %arg0, %c0_i32, %c0_i32_0 : i32, i32, i32
  }
  func.func @transform_1(%arg0: i32) -> (i32, i32) {
    %c0_i32 = arith.constant 0 : i32
    %c0_i32_0 = arith.constant 0 : i32
    %c0_i32_1 = arith.constant 0 : i32
    return %c0_i32, %c0_i32_0 : i32, i32
  }
  func.func @transform_2(%arg0: i32) -> (i32, i32) {
    %c0_i32 = arith.constant 0 : i32
    %c0_i32_0 = arith.constant 0 : i32
    %c0_i32_1 = arith.constant 0 : i32
    return %c0_i32, %c0_i32_0 : i32, i32
  }
  func.func @transform_3(%arg0: i32) -> (i32, i32) {
    %c0_i32 = arith.constant 0 : i32
    %c0_i32_0 = arith.constant 0 : i32
    %c0_i32_1 = arith.constant 0 : i32
    return %c0_i32, %c0_i32_0 : i32, i32
  }
  func.func @transform_4(%arg0: i32) -> (i32, i32) {
    %c0_i32 = arith.constant 0 : i32
    %c0_i32_0 = arith.constant 0 : i32
    %c0_i32_1 = arith.constant 0 : i32
    return %c0_i32, %c0_i32_0 : i32, i32
  }
  func.func @transform_5(%arg0: i32) -> (i32, i32, i32) {
    %c0_i32 = arith.constant 0 : i32
    %c0_i32_0 = arith.constant 0 : i32
    %c0_i32_1 = arith.constant 0 : i32
    return %arg0, %c0_i32, %c0_i32_0 : i32, i32, i32
  }
}

</mosaic_0001>

<llo_original>
// kernel: tpu_custom_call.1
$region0: #{tpu_custom_call.1}
  #allocation0 [shape = 'u32[]', space=smem, size = 0x4, offset = 0x4, fixed_abs, tag = 'smem constant byte address 0x4 - core index']
  #allocation1 [shape = 'u32[144,128]{1,0:T(1,128)}', space=vmem, size = 0x12000, scoped, tag = 'internal scratch']
  #allocation2 [shape = 'f32[8,96]{1,0:T(8,128)}', space=vmem, size = 0x1000, scoped, tag = 'scratch operand']
  #allocation3 [shape = 'f32[8,32]{1,0:T(8,128)}', space=vmem, size = 0x1000, scoped, tag = 'scratch operand']
  %s0 = inlined_call_operand.hbm [shape: f32[2,8,32], index: 0, kind: input, shape index: {}]
  %s1 = inlined_call_operand.hbm [shape: f32[32,96], index: 1, kind: input, shape index: {}]
  %s2 = inlined_call_operand.hbm [shape: f32[1,96], index: 2, kind: input, shape index: {}]
  %s3 = inlined_call_operand.hbm [shape: f32[32,32], index: 3, kind: input, shape index: {}]
  %s4 = inlined_call_operand.hbm [shape: f32[1,32], index: 4, kind: input, shape index: {}]
  %s5 = inlined_call_operand.hbm [shape: f32[2,8,32], index: 5, kind: output, shape index: {}]
  %s6 = sld [smem:[#allocation0]]
  $region73: #{tpu_custom_call.1} parent=0
    _
  %s8 = ssub.s32 1, %s6
  %s9 = scalar_select 0, %s8, %s6
  $region1: #{tpu_custom_call.1} parent=0
    #allocation4 [shape = 'u8[8192]{0}', space=vmem, size = 0x2000, scoped, tag = 'input window, operand 0']
    #allocation5 [shape = 's32[2]{0}', space=sflag, size = 0x8, scoped, tag = 'scoped memory for tpu_custom_call.1']
    #allocation6 [shape = 's32[2]{0}', space=sflag, size = 0x8, scoped, tag = 'scoped memory for tpu_custom_call.1']
    #allocation7 [shape = 'u8[16384]{0}', space=vmem, size = 0x4000, scoped, tag = 'input window, operand 1, single buffered']
    #allocation8 [shape = 's32[1]{0}', space=sflag, size = 0x4, scoped, tag = 'scoped memory for tpu_custom_call.1']
    #allocation9 [shape = 'u8[512]{0}', space=vmem, size = 0x400, scoped, tag = 'input window, operand 2, single buffered']
    #allocation10 [shape = 'u8[16384]{0}', space=vmem, size = 0x4000, scoped, tag = 'input window, operand 3, single buffered']
    #allocation11 [shape = 's32[1]{0}', space=sflag, size = 0x4, scoped, tag = 'scoped memory for tpu_custom_call.1']
    #allocation12 [shape = 'u8[512]{0}', space=vmem, size = 0x400, scoped, tag = 'input window, operand 4, single buffered']
    #allocation13 [shape = 'u8[8192]{0}', space=vmem, size = 0x2000, scoped, tag = 'output window, operand 0']
    %10 = vsyncpa [#allocation5], 0
    %s11 = scalar_lea.sflag [#allocation5], 1
    %12 = vsyncpa %s11, 0
    %13 = vsyncpa [#allocation8], 0
    %14 = vsyncpa [#allocation11], 0
    %15 = vsyncpa [#allocation6], 0
    %s16 = scalar_lea.sflag [#allocation6], 1
    %17 = vsyncpa %s16, 0
    loop: start=0, step=1, limit=4
    $region2: #{tpu_custom_call.1} parent=1 // loop_pre_header
      _
    $region3: #{tpu_custom_call.1} parent=1 // loop_header
      %s19 = sphi 0, %s23
      %p20 = scmp.ge.s32.totalorder %s19, 4
      %s29 = sphi 0, %s31
      %s32 = sphi 0, %s29
      %s33 = sphi 0, %s32
      %s49 = sphi 0, %s33
      %s53 = sphi 0, %s53
      %s55 = sphi 0, %s53
      %s56 = sphi 0, %s55
      %s70 = sphi 0, %s56
      %s74 = sphi 0, %s74
      %s76 = sphi 0, %s74
      %s77 = sphi 0, %s76
      %s91 = sphi 0, %s77
      %s95 = sphi 0, %s95
      %s97 = sphi 0, %s95
      %s98 = sphi 0, %s97
      %s112 = sphi 0, %s98
      %s116 = sphi 0, %s116
      %s118 = sphi 0, %s116
      %s119 = sphi 0, %s118
      %s133 = sphi 0, %s119
      %s139 = sphi 0, %s141
      %s142 = sphi 0, %s139
      %s143 = sphi 0, %s142
      %s159 = sphi 0, %s143
    $region4: #{tpu_custom_call.1} parent=1 // loop_header_branch
      %22 = sbr.rel (%p20) target = $region8
    $region5: #{tpu_custom_call.1} parent=1 // loop_body
      %s24 = ssub.s32 %s19, 1
      %s25 = ssub.s32 %s19, 2
      %s26 = sadd.s32 %s19, 1
      %s27 = ssub.s32 %s19, %s26
      %p28 = scmp.eq.s32.totalorder %s27, 0
      %s30 = sadd.s32 %s29, 1
      %s31 = scalar_select %p28, %s29, %s30
      %p34 = pneg %p28
      %p35 = scmp.eq.s32.totalorder %s19, 1
      %p36 = por %p34, %p35
      %p37 = scmp.ne.s32.totalorder %s29, %s32
      %p38 = scmp.eq.s32.totalorder %s19, 0
      %p39 = por %p37, %p38
      %p40 = scmp.ne.s32.totalorder %s29, %s32
      %p41 = scmp.eq.s32.totalorder %s24, 1
      %p42 = por %p40, %p41
      %p43 = scmp.ne.s32.totalorder %s32, %s33
      %p44 = scmp.eq.s32.totalorder %s24, 0
      %p45 = por %p43, %p44
      %p46 = scmp.ne.s32.totalorder %s32, %s33
      %p47 = scmp.eq.s32.totalorder %s25, 1
      %p48 = por %p46, %p47
      %p50 = scmp.ne.s32.totalorder %s33, %s49
      %p51 = scmp.eq.s32.totalorder %s25, 0
      %p52 = por %p50, %p51
      %s54 = sadd.s32 %s53, 1
      %p57 = scmp.eq.s32.totalorder %s19, 1
      %p58 = scmp.ne.s32.totalorder %s53, %s55
      %p59 = scmp.eq.s32.totalorder %s19, 0
      %p60 = por %p58, %p59
      %p61 = scmp.ne.s32.totalorder %s53, %s55
      %p62 = scmp.eq.s32.totalorder %s24, 1
      %p63 = por %p61, %p62
      %p64 = scmp.ne.s32.totalorder %s55, %s56
      %p65 = scmp.eq.s32.totalorder %s24, 0
      %p66 = por %p64, %p65
      %p67 = scmp.ne.s32.totalorder %s55, %s56
      %p68 = scmp.eq.s32.totalorder %s25, 1
      %p69 = por %p67, %p68
      %p71 = scmp.ne.s32.totalorder %s56, %s70
      %p72 = scmp.eq.s32.totalorder %s25, 0
      %p73 = por %p71, %p72
      %s75 = sadd.s32 %s74, 1
      %p78 = scmp.eq.s32.totalorder %s19, 1
      %p79 = scmp.ne.s32.totalorder %s74, %s76
      %p80 = scmp.eq.s32.totalorder %s19, 0
      %p81 = por %p79, %p80
      %p82 = scmp.ne.s32.totalorder %s74, %s76
      %p83 = scmp.eq.s32.totalorder %s24, 1
      %p84 = por %p82, %p83
      %p85 = scmp.ne.s32.totalorder %s76, %s77
      %p86 = scmp.eq.s32.totalorder %s24, 0
      %p87 = por %p85, %p86
      %p88 = scmp.ne.s32.totalorder %s76, %s77
      %p89 = scmp.eq.s32.totalorder %s25, 1
      %p90 = por %p88, %p89
      %p92 = scmp.ne.s32.totalorder %s77, %s91
      %p93 = scmp.eq.s32.totalorder %s25, 0
      %p94 = por %p92, %p93
      %s96 = sadd.s32 %s95, 1
      %p99 = scmp.eq.s32.totalorder %s19, 1
      %p100 = scmp.ne.s32.totalorder %s95, %s97
      %p101 = scmp.eq.s32.totalorder %s19, 0
      %p102 = por %p100, %p101
      %p103 = scmp.ne.s32.totalorder %s95, %s97
      %p104 = scmp.eq.s32.totalorder %s24, 1
      %p105 = por %p103, %p104
      %p106 = scmp.ne.s32.totalorder %s97, %s98
      %p107 = scmp.eq.s32.totalorder %s24, 0
      %p108 = por %p106, %p107
      %p109 = scmp.ne.s32.totalorder %s97, %s98
      %p110 = scmp.eq.s32.totalorder %s25, 1
      %p111 = por %p109, %p110
      %p113 = scmp.ne.s32.totalorder %s98, %s112
      %p114 = scmp.eq.s32.totalorder %s25, 0
      %p115 = por %p113, %p114
      %s117 = sadd.s32 %s116, 1
      %p120 = scmp.eq.s32.totalorder %s19, 1
      %p121 = scmp.ne.s32.totalorder %s116, %s118
      %p122 = scmp.eq.s32.totalorder %s19, 0
      %p123 = por %p121, %p122
      %p124 = scmp.ne.s32.totalorder %s116, %s118
      %p125 = scmp.eq.s32.totalorder %s24, 1
      %p126 = por %p124, %p125
      %p127 = scmp.ne.s32.totalorder %s118, %s119
      %p128 = scmp.eq.s32.totalorder %s24, 0
      %p129 = por %p127, %p128
      %p130 = scmp.ne.s32.totalorder %s118, %s119
      %p131 = scmp.eq.s32.totalorder %s25, 1
      %p132 = por %p130, %p131
      %p134 = scmp.ne.s32.totalorder %s119, %s133
      %p135 = scmp.eq.s32.totalorder %s25, 0
      %p136 = por %p134, %p135
      %s137 = ssub.s32 %s19, %s26
      %p138 = scmp.eq.s32.totalorder %s137, 0
      %s140 = sadd.s32 %s139, 1
      %s141 = scalar_select %p138, %s139, %s140
      %p144 = pneg %p138
      %p145 = scmp.eq.s32.totalorder %s19, 1
      %p146 = por %p144, %p145
      %p147 = scmp.ne.s32.totalorder %s139, %s142
      %p148 = scmp.eq.s32.totalorder %s19, 0
      %p149 = por %p147, %p148
      %p150 = scmp.ne.s32.totalorder %s139, %s142
      %p151 = scmp.eq.s32.totalorder %s24, 1
      %p152 = por %p150, %p151
      %p153 = scmp.ne.s32.totalorder %s142, %s143
      %p154 = scmp.eq.s32.totalorder %s24, 0
      %p155 = por %p153, %p154
      %p156 = scmp.ne.s32.totalorder %s142, %s143
      %p157 = scmp.eq.s32.totalorder %s25, 1
      %p158 = por %p156, %p157
      %p160 = scmp.ne.s32.totalorder %s143, %s159
      %p161 = scmp.eq.s32.totalorder %s25, 0
      %p162 = por %p160, %p161
      %p163 = scmp.le.s32.totalorder 1, %s19
      %p164 = scmp.lt.s32.totalorder %s19, 3
      %p165 = pnand %p163, %p164
      %p166 = pneg %p165
      // Predicated region
      $region9: #{tpu_custom_call.1} parent=5 // pred_check
        _
      $region10: #{tpu_custom_call.1} parent=5 // pred_check_branch
        %168 = sbr.rel (%p165) target = $region12
      $region11: #{tpu_custom_call.1} parent=5 // pred_region
        %s169 = ssub.s32 %s19, 1
        // Predicated region
        $region13: #{tpu_custom_call.1} parent=11 // pred_check
          %p170 = pneg %p66
        $region14: #{tpu_custom_call.1} parent=11 // pred_check_branch
          %172 = sbr.rel (%p170) target = $region16
        $region15: #{tpu_custom_call.1} parent=11 // pred_region
          %s174 = ssub.s32 512, 512
          %175 = vsyncadd [#allocation8], %s174
          %s176 = sshll.u32 [#allocation7], 4
          %s177 = int_to_ptr.vmem [resolvable:$true] %s176
          %182 = dma.hbm_to_vmem [thread:$0]  %s1, 512, %s177, [#allocation8], 128, 128, 8
        $region16: #{tpu_custom_call.1} parent=11 // pred_fallthru
          _
        // Predicated region
        $region17: #{tpu_custom_call.1} parent=11 // pred_check
          %p183 = pneg %p87
        $region18: #{tpu_custom_call.1} parent=11 // pred_check_branch
          %185 = sbr.rel (%p183) target = $region20
        $region19: #{tpu_custom_call.1} parent=11 // pred_region
          %s187 = ssub.s32 16, 16
          %188 = vsyncadd [#allocation8], %s187
          %s190 = sshll.u32 [#allocation9], 4
          %s191 = int_to_ptr.vmem [resolvable:$true] %s190
          %193 = dma.hbm_to_vmem [thread:$0]  %s2, 16, %s191, [#allocation8]
        $region20: #{tpu_custom_call.1} parent=11 // pred_fallthru
          _
        // Predicated region
        $region21: #{tpu_custom_call.1} parent=11 // pred_check
          %p194 = pneg %p108
        $region22: #{tpu_custom_call.1} parent=11 // pred_check_branch
          %196 = sbr.rel (%p194) target = $region24
        $region23: #{tpu_custom_call.1} parent=11 // pred_region
          %s198 = ssub.s32 512, 512
          %199 = vsyncadd [#allocation11], %s198
          %s200 = sshll.u32 [#allocation10], 4
          %s201 = int_to_ptr.vmem [resolvable:$true] %s200
          %206 = dma.hbm_to_vmem [thread:$0]  %s3, 512, %s201, [#allocation11], 128, 128, 8
        $region24: #{tpu_custom_call.1} parent=11 // pred_fallthru
          _
        // Predicated region
        $region25: #{tpu_custom_call.1} parent=11 // pred_check
          %p207 = pneg %p129
        $region26: #{tpu_custom_call.1} parent=11 // pred_check_branch
          %209 = sbr.rel (%p207) target = $region28
        $region27: #{tpu_custom_call.1} parent=11 // pred_region
          %s211 = ssub.s32 16, 16
          %212 = vsyncadd [#allocation11], %s211
          %s214 = sshll.u32 [#allocation12], 4
          %s215 = int_to_ptr.vmem [resolvable:$true] %s214
          %217 = dma.hbm_to_vmem [thread:$0]  %s4, 16, %s215, [#allocation11]
        $region28: #{tpu_custom_call.1} parent=11 // pred_fallthru
          _
      $region12: #{tpu_custom_call.1} parent=5 // pred_fallthru
        _
      %p218 = scmp.lt.s32.totalorder %s19, 2
      // Predicated region
      $region29: #{tpu_custom_call.1} parent=5 // pred_check
        %p219 = pneg %p218
      $region30: #{tpu_custom_call.1} parent=5 // pred_check_branch
        %221 = sbr.rel (%p219) target = $region32
      $region31: #{tpu_custom_call.1} parent=5 // pred_region
        // Predicated region
        $region33: #{tpu_custom_call.1} parent=31 // pred_check
          %p222 = pneg %p39
        $region34: #{tpu_custom_call.1} parent=31 // pred_check_branch
          %224 = sbr.rel (%p222) target = $region36
        $region35: #{tpu_custom_call.1} parent=31 // pred_region
          %s225 = sand.u32 %s29, 1
          %s226 = scalar_lea.sflag [#allocation5], %s225
          %s227 = sand.u32 %s29, 1
          %s228 = smul.addr %s227, 8
          %s229 = scalar_lea.vmem [#allocation4], %s228
          %s231 = ssub.s32 128, 128
          %232 = vsyncadd %s226, %s231
          %s233 = smul.addr %s19, 128
          %s234 = scalar_lea.hbm %s0, %s233
          %s236 = sshll.u32 %s229, 4
          %s237 = int_to_ptr.vmem [resolvable:$true] %s236
          %239 = dma.hbm_to_vmem [thread:$0]  %s234, 128, %s237, %s226
        $region36: #{tpu_custom_call.1} parent=31 // pred_fallthru
          _
      $region32: #{tpu_custom_call.1} parent=5 // pred_fallthru
        _
      %p240 = scmp.le.s32.totalorder 1, %s19
      %p241 = scmp.lt.s32.totalorder %s19, 3
      %p242 = pnand %p240, %p241
      %p243 = pneg %p242
      // Predicated region
      $region37: #{tpu_custom_call.1} parent=5 // pred_check
        _
      $region38: #{tpu_custom_call.1} parent=5 // pred_check_branch
        %245 = sbr.rel (%p242) target = $region40
      $region39: #{tpu_custom_call.1} parent=5 // pred_region
        %s246 = ssub.s32 %s19, 1
        %s247 = sand.u32 %s32, 1
        %s248 = scalar_lea.sflag [#allocation5], %s247
        %s249 = sand.u32 %s32, 1
        %s250 = smul.addr %s249, 8
        %s251 = scalar_lea.vmem [#allocation4], %s250
        // Predicated region
        $region41: #{tpu_custom_call.1} parent=39 // pred_check
          %p252 = pneg %p45
        $region42: #{tpu_custom_call.1} parent=39 // pred_check_branch
          %254 = sbr.rel (%p252) target = $region44
        $region43: #{tpu_custom_call.1} parent=39 // pred_region
          %255 = dma.done %s248, 128
        $region44: #{tpu_custom_call.1} parent=39 // pred_fallthru
          _
        // Predicated region
        $region45: #{tpu_custom_call.1} parent=39 // pred_check
          %p256 = pneg %p66
        $region46: #{tpu_custom_call.1} parent=39 // pred_check_branch
          %258 = sbr.rel (%p256) target = $region48
        $region47: #{tpu_custom_call.1} parent=39 // pred_region
          %259 = dma.done [#allocation8], 512
        $region48: #{tpu_custom_call.1} parent=39 // pred_fallthru
          _
        // Predicated region
        $region49: #{tpu_custom_call.1} parent=39 // pred_check
          %p260 = pneg %p87
        $region50: #{tpu_custom_call.1} parent=39 // pred_check_branch
          %262 = sbr.rel (%p260) target = $region52
        $region51: #{tpu_custom_call.1} parent=39 // pred_region
          %263 = dma.done [#allocation8], 16
        $region52: #{tpu_custom_call.1} parent=39 // pred_fallthru
          _
        // Predicated region
        $region53: #{tpu_custom_call.1} parent=39 // pred_check
          %p264 = pneg %p108
        $region54: #{tpu_custom_call.1} parent=39 // pred_check_branch
          %266 = sbr.rel (%p264) target = $region56
        $region55: #{tpu_custom_call.1} parent=39 // pred_region
          %267 = dma.done [#allocation11], 512
        $region56: #{tpu_custom_call.1} parent=39 // pred_fallthru
          _
        // Predicated region
        $region57: #{tpu_custom_call.1} parent=39 // pred_check
          %p268 = pneg %p129
        $region58: #{tpu_custom_call.1} parent=39 // pred_check_branch
          %270 = sbr.rel (%p268) target = $region60
        $region59: #{tpu_custom_call.1} parent=39 // pred_region
          %271 = dma.done [#allocation11], 16
        $region60: #{tpu_custom_call.1} parent=39 // pred_fallthru
          _
        %s272 = sand.u32 %s32, 1
        %s273 = scalar_lea.sflag [#allocation5], %s272
        %s274 = sand.u32 %s32, 1
        %s275 = smul.addr %s274, 8
        %s276 = scalar_lea.vmem [#allocation4], %s275
        %p277 = pneg %p45
        %p278 = pneg %p42
        %p279 = pneg %p66
        %p280 = pneg %p63
        %p281 = pneg %p87
        %p282 = pneg %p84
        %p283 = pneg %p108
        %p284 = pneg %p105
        %p285 = pneg %p129
        %p286 = pneg %p126
        %p287 = pneg %p155
        %p288 = pneg %p152
        %s289 = sand.u32 %s142, 1
        %s290 = scalar_lea.sflag [#allocation6], %s289
        %s291 = sand.u32 %s142, 1
        %s292 = smul.addr %s291, 8
        %s293 = scalar_lea.vmem [#allocation13], %s292
        %v294 = vld [vmem:[%s251] sm:$0xff]
        %v295 = vld [vmem:[#allocation7] sm:$0xff]
        %v296 = vld [vmem:[#allocation7 + $0x8] sm:$0xff]
        %v297 = vld [vmem:[#allocation7 + $0x10] sm:$0xff]
        %v298 = vld [vmem:[#allocation7 + $0x18] sm:$0xff]
        %v299 = vld [vmem:[#allocation9] sm:$0x1]
        %v301 = vlaneseq
        %v302 = vshrl.u32 %v301, 7
        %v303 = vsub.s32 0, %v302
        %v304 = vrot.slane %v299, %v303
        %vm306 = vcmask 261120
        %v308 = vsel %vm306, %v294, 0
        %310 = vmatprep.subr.mxu0 0.0
        %311 = vmatpush1.msra.mxu0 %v295
        %312 = vmatprep.subr.mxu0 0.0
        %313 = vmatpush1.msra.mxu0 %v296
        %314 = vmatprep.subr.mxu0 0.0
        %315 = vmatpush1.msra.mxu0 %v297
        %316 = vmatprep.subr.mxu0 0.0
        %317 = vmatpush1.msra.mxu0 %v298
        %318 = vmatprep.subr.mxu0 0.0
        %319 = vmatpush1.msra.mxu0 0.0
        %320 = vmatprep.subr.mxu0 0.0
        %321 = vmatpush1.msra.mxu0 0.0
        %322 = vmatprep.subr.mxu0 0.0
        %323 = vmatpush1.msra.mxu0 0.0
        %324 = vmatprep.subr.mxu0 0.0
        %325 = vmatpush1.msra.mxu0 0.0
        %326 = vmatprep.subr.mxu0 0.0
        %327 = vmatpush1.msra.mxu0 0.0
        %328 = vmatprep.subr.mxu0 0.0
        %329 = vmatpush1.msra.mxu0 0.0
        %330 = vmatprep.subr.mxu0 0.0
        %331 = vmatpush1.msra.mxu0 0.0
        %332 = vmatprep.subr.mxu0 0.0
        %333 = vmatpush1.msra.mxu0 0.0
        %334 = vmatprep.subr.mxu0 0.0
        %335 = vmatpush1.msra.mxu0 0.0
        %336 = vmatprep.subr.mxu0 0.0
        %337 = vmatpush1.msra.mxu0 0.0
        %338 = vmatprep.subr.mxu0 0.0
        %339 = vmatpush1.msra.mxu0 0.0
        %340 = vmatprep.subr.mxu0 0.0
        %341 = vmatpush1.msra.mxu0 0.0
        %342 = vmatprep.subr.mxu0 0.0
        %343 = vmatpush1.msra.mxu0 0.0
        %344 = vmatprep.subr.mxu0 0.0
        %345 = vmatpush1.msra.mxu0 0.0
        %346 = vmatprep.subr.mxu0 0.0
        %347 = vmatpush1.msra.mxu0 0.0
        %348 = vmatprep.subr.mxu0 0.0
        %349 = vmatpush1.msra.mxu0 0.0
        %350 = vmatprep.subr.mxu0 0.0
        %351 = vmatpush1.msra.mxu0 0.0
        %352 = vmatprep.subr.mxu0 0.0
        %353 = vmatpush1.msra.mxu0 0.0
        %354 = vmatprep.subr.mxu0 0.0
        %355 = vmatpush1.msra.mxu0 0.0
        %356 = vmatprep.subr.mxu0 0.0
        %357 = vmatpush1.msra.mxu0 0.0
        %358 = vmatprep.subr.mxu0 0.0
        %359 = vmatpush1.msra.mxu0 0.0
        %360 = vmatprep.subr.mxu0 0.0
        %361 = vmatpush1.msra.mxu0 0.0
        %362 = vmatprep.subr.mxu0 0.0
        %363 = vmatpush1.msra.mxu0 0.0
        %364 = vmatprep.subr.mxu0 0.0
        %365 = vmatpush1.msra.mxu0 0.0
        %366 = vmatprep.subr.mxu0 0.0
        %367 = vmatpush1.msra.mxu0 0.0
        %368 = vmatprep.subr.mxu0 0.0
        %369 = vmatpush1.msra.mxu0 0.0
        %370 = vmatprep.subr.mxu0 0.0
        %371 = vmatpush1.msra.mxu0 0.0
        %372 = vmatprep.subr.mxu0 0.0
        %373 = vmatpush1.msra.mxu0 0.0
        %374 = vmatprep.mubr.f32.mxu0 0.0
        %375 = vmatmul.mubr.f32.gmra.mrb[0].mxu0 %v308
        %v376 = vpop.f32.mrb[0].mxu0
        %v377 = vadd.f32 %v304, %v376
        %v378 = vpop.f32.mrb[0].mxu0
        %379 = vdwg.mxu0
        %vm380 = vcmask 785408
        %381 = vst.msk [vmem:[#allocation2] sm:$0xff] %vm380, %v377
        %v382 = vld [vmem:[#allocation2] sm:$0xff]
        %v383 = vld [vmem:[#allocation2] sm:$0xff]
        %385 = vrot.lane.b32.xlu0 %v382, 96
        %v386 = vpop.permute.xlu0 %385
        %vm387 = vcmask 64512
        %v389 = vsel %vm387, %v383, 0
        %v391 = vsel %vm387, %v386, 0
        %393 = vmatprep.subr.mxu0 0.0
        %394 = vmatpush1.xpose.msra.mxu0 %v391
        %395 = vmatprep.subr.mxu0 0.0
        %396 = vmatpush1.xpose.msra.mxu0 0.0
        %397 = vmatprep.subr.mxu0 0.0
        %398 = vmatpush1.xpose.msra.mxu0 0.0
        %399 = vmatprep.subr.mxu0 0.0
        %400 = vmatpush1.xpose.msra.mxu0 0.0
        %401 = vmatprep.subr.mxu0 0.0
        %402 = vmatpush1.xpose.msra.mxu0 0.0
        %403 = vmatprep.subr.mxu0 0.0
        %404 = vmatpush1.xpose.msra.mxu0 0.0
        %405 = vmatprep.subr.mxu0 0.0
        %406 = vmatpush1.xpose.msra.mxu0 0.0
        %407 = vmatprep.subr.mxu0 0.0
        %408 = vmatpush1.xpose.msra.mxu0 0.0
        %409 = vmatprep.subr.mxu0 0.0
        %410 = vmatpush1.xpose.msra.mxu0 0.0
        %411 = vmatprep.subr.mxu0 0.0
        %412 = vmatpush1.xpose.msra.mxu0 0.0
        %413 = vmatprep.subr.mxu0 0.0
        %414 = vmatpush1.xpose.msra.mxu0 0.0
        %415 = vmatprep.subr.mxu0 0.0
        %416 = vmatpush1.xpose.msra.mxu0 0.0
        %417 = vmatprep.subr.mxu0 0.0
        %418 = vmatpush1.xpose.msra.mxu0 0.0
        %419 = vmatprep.subr.mxu0 0.0
        %420 = vmatpush1.xpose.msra.mxu0 0.0
        %421 = vmatprep.subr.mxu0 0.0
        %422 = vmatpush1.xpose.msra.mxu0 0.0
        %423 = vmatprep.subr.mxu0 0.0
        %424 = vmatpush1.xpose.msra.mxu0 0.0
        %425 = vmatprep.subr.mxu0 0.0
        %426 = vmatpush1.xpose.msra.mxu0 0.0
        %427 = vmatprep.subr.mxu0 0.0
        %428 = vmatpush1.xpose.msra.mxu0 0.0
        %429 = vmatprep.subr.mxu0 0.0
        %430 = vmatpush1.xpose.msra.mxu0 0.0
        %431 = vmatprep.subr.mxu0 0.0
        %432 = vmatpush1.xpose.msra.mxu0 0.0
        %433 = vmatprep.subr.mxu0 0.0
        %434 = vmatpush1.xpose.msra.mxu0 0.0
        %435 = vmatprep.subr.mxu0 0.0
        %436 = vmatpush1.xpose.msra.mxu0 0.0
        %437 = vmatprep.subr.mxu0 0.0
        %438 = vmatpush1.xpose.msra.mxu0 0.0
        %439 = vmatprep.subr.mxu0 0.0
        %440 = vmatpush1.xpose.msra.mxu0 0.0
        %441 = vmatprep.subr.mxu0 0.0
        %442 = vmatpush1.xpose.msra.mxu0 0.0
        %443 = vmatprep.subr.mxu0 0.0
        %444 = vmatpush1.xpose.msra.mxu0 0.0
        %445 = vmatprep.subr.mxu0 0.0
        %446 = vmatpush1.xpose.msra.mxu0 0.0
        %447 = vmatprep.subr.mxu0 0.0
        %448 = vmatpush1.xpose.msra.mxu0 0.0
        %449 = vmatprep.subr.mxu0 0.0
        %450 = vmatpush1.xpose.msra.mxu0 0.0
        %451 = vmatprep.subr.mxu0 0.0
        %452 = vmatpush1.xpose.msra.mxu0 0.0
        %453 = vmatprep.subr.mxu0 0.0
        %454 = vmatpush1.xpose.msra.mxu0 0.0
        %455 = vmatprep.subr.mxu0 0.0
        %456 = vmatpush1.xpose.msra.mxu0 0.0
        %457 = vmatprep.mubr.f32.mxu0 0.0
        %458 = vmatmul.mubr.f32.gmra.mrb[0].mxu0 %v389
        %v459 = vpop.f32.mrb[0].mxu0
        %v460 = vadd.f32 0.0, %v459
        %v461 = vpop.f32.mrb[0].mxu0
        %462 = vdwg.mxu0
        %v463 = vsel %vm387, %v460, -inf
        %464 = vmax.xlane.f32.xlu0 %v463
        %v465 = vpop.xlane.xlu0 %464
        %v466 = vsub.f32 %v460, %v465
        %v467 = vmul.f32 %v466, 1.442695
        %v468 = vpow.pop %v467
        %v469 = vsel %vm387, %v468, 0.0
        %470 = vadd.xlane.f32.xlu0 %v469
        %v471 = vpop.xlane.xlu0 %470
        %v472 = vrcp.pop %v471
        %v473 = vmul.f32 %v468, %v472
        %474 = vrot.lane.b32.xlu0 %v382, 64
        %v475 = vpop.permute.xlu0 %474
        %v478 = vsel %vm387, %v473, 0
        %480 = vmatprep.subr.mxu0 0.0
        %481 = vmatpush1.msra.mxu0 %v475
        %482 = vmatprep.subr.mxu0 0.0
        %483 = vmatpush1.msra.mxu0 0.0
        %484 = vmatprep.subr.mxu0 0.0
        %485 = vmatpush1.msra.mxu0 0.0
        %486 = vmatprep.subr.mxu0 0.0
        %487 = vmatpush1.msra.mxu0 0.0
        %488 = vmatprep.subr.mxu0 0.0
        %489 = vmatpush1.msra.mxu0 0.0
        %490 = vmatprep.subr.mxu0 0.0
        %491 = vmatpush1.msra.mxu0 0.0
        %492 = vmatprep.subr.mxu0 0.0
        %493 = vmatpush1.msra.mxu0 0.0
        %494 = vmatprep.subr.mxu0 0.0
        %495 = vmatpush1.msra.mxu0 0.0
        %496 = vmatprep.subr.mxu0 0.0
        %497 = vmatpush1.msra.mxu0 0.0
        %498 = vmatprep.subr.mxu0 0.0
        %499 = vmatpush1.msra.mxu0 0.0
        %500 = vmatprep.subr.mxu0 0.0
        %501 = vmatpush1.msra.mxu0 0.0
        %502 = vmatprep.subr.mxu0 0.0
        %503 = vmatpush1.msra.mxu0 0.0
        %504 = vmatprep.subr.mxu0 0.0
        %505 = vmatpush1.msra.mxu0 0.0
        %506 = vmatprep.subr.mxu0 0.0
        %507 = vmatpush1.msra.mxu0 0.0
        %508 = vmatprep.subr.mxu0 0.0
        %509 = vmatpush1.msra.mxu0 0.0
        %510 = vmatprep.subr.mxu0 0.0
        %511 = vmatpush1.msra.mxu0 0.0
        %512 = vmatprep.subr.mxu0 0.0
        %513 = vmatpush1.msra.mxu0 0.0
        %514 = vmatprep.subr.mxu0 0.0
        %515 = vmatpush1.msra.mxu0 0.0
        %516 = vmatprep.subr.mxu0 0.0
        %517 = vmatpush1.msra.mxu0 0.0
        %518 = vmatprep.subr.mxu0 0.0
        %519 = vmatpush1.msra.mxu0 0.0
        %520 = vmatprep.subr.mxu0 0.0
        %521 = vmatpush1.msra.mxu0 0.0
        %522 = vmatprep.subr.mxu0 0.0
        %523 = vmatpush1.msra.mxu0 0.0
        %524 = vmatprep.subr.mxu0 0.0
        %525 = vmatpush1.msra.mxu0 0.0
        %526 = vmatprep.subr.mxu0 0.0
        %527 = vmatpush1.msra.mxu0 0.0
        %528 = vmatprep.subr.mxu0 0.0
        %529 = vmatpush1.msra.mxu0 0.0
        %530 = vmatprep.subr.mxu0 0.0
        %531 = vmatpush1.msra.mxu0 0.0
        %532 = vmatprep.subr.mxu0 0.0
        %533 = vmatpush1.msra.mxu0 0.0
        %534 = vmatprep.subr.mxu0 0.0
        %535 = vmatpush1.msra.mxu0 0.0
        %536 = vmatprep.subr.mxu0 0.0
        %537 = vmatpush1.msra.mxu0 0.0
        %538 = vmatprep.subr.mxu0 0.0
        %539 = vmatpush1.msra.mxu0 0.0
        %540 = vmatprep.subr.mxu0 0.0
        %541 = vmatpush1.msra.mxu0 0.0
        %542 = vmatprep.subr.mxu0 0.0
        %543 = vmatpush1.msra.mxu0 0.0
        %544 = vmatprep.mubr.f32.mxu0 0.0
        %545 = vmatmul.mubr.f32.gmra.mrb[0].mxu0 %v478
        %v546 = vpop.f32.mrb[0].mxu0
        %v547 = vadd.f32 0.0, %v546
        %v548 = vpop.f32.mrb[0].mxu0
        %549 = vdwg.mxu0
        %550 = vst.msk [vmem:[#allocation3] sm:$0xff] %vm387, %v547
        %v551 = vld [vmem:[#allocation2] sm:$0xff]
        %v552 = vld [vmem:[#allocation2] sm:$0xff]
        %554 = vrot.lane.b32.xlu0 %v552, 120
        %v555 = vpop.permute.xlu0 %554
        %557 = vrot.lane.b32.xlu0 %v551, 88
        %v558 = vpop.permute.xlu0 %557
        %v559 = vsel %vm387, %v555, 0
        %v561 = vsel %vm387, %v558, 0
        %563 = vmatprep.subr.mxu0 0.0
        %564 = vmatpush1.xpose.msra.mxu0 %v561
        %565 = vmatprep.subr.mxu0 0.0
        %566 = vmatpush1.xpose.msra.mxu0 0.0
        %567 = vmatprep.subr.mxu0 0.0
        %568 = vmatpush1.xpose.msra.mxu0 0.0
        %569 = vmatprep.subr.mxu0 0.0
        %570 = vmatpush1.xpose.msra.mxu0 0.0
        %571 = vmatprep.subr.mxu0 0.0
        %572 = vmatpush1.xpose.msra.mxu0 0.0
        %573 = vmatprep.subr.mxu0 0.0
        %574 = vmatpush1.xpose.msra.mxu0 0.0
        %575 = vmatprep.subr.mxu0 0.0
        %576 = vmatpush1.xpose.msra.mxu0 0.0
        %577 = vmatprep.subr.mxu0 0.0
        %578 = vmatpush1.xpose.msra.mxu0 0.0
        %579 = vmatprep.subr.mxu0 0.0
        %580 = vmatpush1.xpose.msra.mxu0 0.0
        %581 = vmatprep.subr.mxu0 0.0
        %582 = vmatpush1.xpose.msra.mxu0 0.0
        %583 = vmatprep.subr.mxu0 0.0
        %584 = vmatpush1.xpose.msra.mxu0 0.0
        %585 = vmatprep.subr.mxu0 0.0
        %586 = vmatpush1.xpose.msra.mxu0 0.0
        %587 = vmatprep.subr.mxu0 0.0
        %588 = vmatpush1.xpose.msra.mxu0 0.0
        %589 = vmatprep.subr.mxu0 0.0
        %590 = vmatpush1.xpose.msra.mxu0 0.0
        %591 = vmatprep.subr.mxu0 0.0
        %592 = vmatpush1.xpose.msra.mxu0 0.0
        %593 = vmatprep.subr.mxu0 0.0
        %594 = vmatpush1.xpose.msra.mxu0 0.0
        %595 = vmatprep.subr.mxu0 0.0
        %596 = vmatpush1.xpose.msra.mxu0 0.0
        %597 = vmatprep.subr.mxu0 0.0
        %598 = vmatpush1.xpose.msra.mxu0 0.0
        %599 = vmatprep.subr.mxu0 0.0
        %600 = vmatpush1.xpose.msra.mxu0 0.0
        %601 = vmatprep.subr.mxu0 0.0
        %602 = vmatpush1.xpose.msra.mxu0 0.0
        %603 = vmatprep.subr.mxu0 0.0
        %604 = vmatpush1.xpose.msra.mxu0 0.0
        %605 = vmatprep.subr.mxu0 0.0
        %606 = vmatpush1.xpose.msra.mxu0 0.0
        %607 = vmatprep.subr.mxu0 0.0
        %608 = vmatpush1.xpose.msra.mxu0 0.0
        %609 = vmatprep.subr.mxu0 0.0
        %610 = vmatpush1.xpose.msra.mxu0 0.0
        %611 = vmatprep.subr.mxu0 0.0
        %612 = vmatpush1.xpose.msra.mxu0 0.0
        %613 = vmatprep.subr.mxu0 0.0
        %614 = vmatpush1.xpose.msra.mxu0 0.0
        %615 = vmatprep.subr.mxu0 0.0
        %616 = vmatpush1.xpose.msra.mxu0 0.0
        %617 = vmatprep.subr.mxu0 0.0
        %618 = vmatpush1.xpose.msra.mxu0 0.0
        %619 = vmatprep.subr.mxu0 0.0
        %620 = vmatpush1.xpose.msra.mxu0 0.0
        %621 = vmatprep.subr.mxu0 0.0
        %622 = vmatpush1.xpose.msra.mxu0 0.0
        %623 = vmatprep.subr.mxu0 0.0
        %624 = vmatpush1.xpose.msra.mxu0 0.0
        %625 = vmatprep.subr.mxu0 0.0
        %626 = vmatpush1.xpose.msra.mxu0 0.0
        %627 = vmatprep.mubr.f32.mxu0 0.0
        %628 = vmatmul.mubr.f32.gmra.mrb[0].mxu0 %v559
        %v629 = vpop.f32.mrb[0].mxu0
        %v630 = vadd.f32 0.0, %v629
        %v631 = vpop.f32.mrb[0].mxu0
        %632 = vdwg.mxu0
        %v633 = vsel %vm387, %v630, -inf
        %634 = vmax.xlane.f32.xlu0 %v633
        %v635 = vpop.xlane.xlu0 %634
        %v636 = vsub.f32 %v630, %v635
        %v637 = vmul.f32 %v636, 1.442695
        %v638 = vpow.pop %v637
        %v639 = vsel %vm387, %v638, 0.0
        %640 = vadd.xlane.f32.xlu0 %v639
        %v641 = vpop.xlane.xlu0 %640
        %v642 = vrcp.pop %v641
        %v643 = vmul.f32 %v638, %v642
        %644 = vrot.lane.b32.xlu0 %v551, 56
        %v645 = vpop.permute.xlu0 %644
        %v648 = vsel %vm387, %v643, 0
        %650 = vmatprep.subr.mxu0 0.0
        %651 = vmatpush1.msra.mxu0 %v645
        %652 = vmatprep.subr.mxu0 0.0
        %653 = vmatpush1.msra.mxu0 0.0
        %654 = vmatprep.subr.mxu0 0.0
        %655 = vmatpush1.msra.mxu0 0.0
        %656 = vmatprep.subr.mxu0 0.0
        %657 = vmatpush1.msra.mxu0 0.0
        %658 = vmatprep.subr.mxu0 0.0
        %659 = vmatpush1.msra.mxu0 0.0
        %660 = vmatprep.subr.mxu0 0.0
        %661 = vmatpush1.msra.mxu0 0.0
        %662 = vmatprep.subr.mxu0 0.0
        %663 = vmatpush1.msra.mxu0 0.0
        %664 = vmatprep.subr.mxu0 0.0
        %665 = vmatpush1.msra.mxu0 0.0
        %666 = vmatprep.subr.mxu0 0.0
        %667 = vmatpush1.msra.mxu0 0.0
        %668 = vmatprep.subr.mxu0 0.0
        %669 = vmatpush1.msra.mxu0 0.0
        %670 = vmatprep.subr.mxu0 0.0
        %671 = vmatpush1.msra.mxu0 0.0
        %672 = vmatprep.subr.mxu0 0.0
        %673 = vmatpush1.msra.mxu0 0.0
        %674 = vmatprep.subr.mxu0 0.0
        %675 = vmatpush1.msra.mxu0 0.0
        %676 = vmatprep.subr.mxu0 0.0
        %677 = vmatpush1.msra.mxu0 0.0
        %678 = vmatprep.subr.mxu0 0.0
        %679 = vmatpush1.msra.mxu0 0.0
        %680 = vmatprep.subr.mxu0 0.0
        %681 = vmatpush1.msra.mxu0 0.0
        %682 = vmatprep.subr.mxu0 0.0
        %683 = vmatpush1.msra.mxu0 0.0
        %684 = vmatprep.subr.mxu0 0.0
        %685 = vmatpush1.msra.mxu0 0.0
        %686 = vmatprep.subr.mxu0 0.0
        %687 = vmatpush1.msra.mxu0 0.0
        %688 = vmatprep.subr.mxu0 0.0
        %689 = vmatpush1.msra.mxu0 0.0
        %690 = vmatprep.subr.mxu0 0.0
        %691 = vmatpush1.msra.mxu0 0.0
        %692 = vmatprep.subr.mxu0 0.0
        %693 = vmatpush1.msra.mxu0 0.0
        %694 = vmatprep.subr.mxu0 0.0
        %695 = vmatpush1.msra.mxu0 0.0
        %696 = vmatprep.subr.mxu0 0.0
        %697 = vmatpush1.msra.mxu0 0.0
        %698 = vmatprep.subr.mxu0 0.0
        %699 = vmatpush1.msra.mxu0 0.0
        %700 = vmatprep.subr.mxu0 0.0
        %701 = vmatpush1.msra.mxu0 0.0
        %702 = vmatprep.subr.mxu0 0.0
        %703 = vmatpush1.msra.mxu0 0.0
        %704 = vmatprep.subr.mxu0 0.0
        %705 = vmatpush1.msra.mxu0 0.0
        %706 = vmatprep.subr.mxu0 0.0
        %707 = vmatpush1.msra.mxu0 0.0
        %708 = vmatprep.subr.mxu0 0.0
        %709 = vmatpush1.msra.mxu0 0.0
        %710 = vmatprep.subr.mxu0 0.0
        %711 = vmatpush1.msra.mxu0 0.0
        %712 = vmatprep.subr.mxu0 0.0
        %713 = vmatpush1.msra.mxu0 0.0
        %714 = vmatprep.mubr.f32.mxu0 0.0
        %715 = vmatmul.mubr.f32.gmra.mrb[0].mxu0 %v648
        %v716 = vpop.f32.mrb[0].mxu0
        %v717 = vadd.f32 0.0, %v716
        %v718 = vpop.f32.mrb[0].mxu0
        %719 = vdwg.mxu0
        %721 = vrot.lane.b32.xlu0 %v717, 8
        %v722 = vpop.permute.xlu0 %721
        %vm724 = vcmask 130112
        %725 = vst.msk [vmem:[#allocation3] sm:$0xff] %vm724, %v722
        %v726 = vld [vmem:[#allocation2] sm:$0xff]
        %v727 = vld [vmem:[#allocation2] sm:$0xff]
        %729 = vrot.lane.b32.xlu0 %v727, 112
        %v730 = vpop.permute.xlu0 %729
        %732 = vrot.lane.b32.xlu0 %v726, 80
        %v733 = vpop.permute.xlu0 %732
        %v734 = vsel %vm387, %v730, 0
        %v736 = vsel %vm387, %v733, 0
        %738 = vmatprep.subr.mxu0 0.0
        %739 = vmatpush1.xpose.msra.mxu0 %v736
        %740 = vmatprep.subr.mxu0 0.0
        %741 = vmatpush1.xpose.msra.mxu0 0.0
        %742 = vmatprep.subr.mxu0 0.0
        %743 = vmatpush1.xpose.msra.mxu0 0.0
        %744 = vmatprep.subr.mxu0 0.0
        %745 = vmatpush1.xpose.msra.mxu0 0.0
        %746 = vmatprep.subr.mxu0 0.0
        %747 = vmatpush1.xpose.msra.mxu0 0.0
        %748 = vmatprep.subr.mxu0 0.0
        %749 = vmatpush1.xpose.msra.mxu0 0.0
        %750 = vmatprep.subr.mxu0 0.0
        %751 = vmatpush1.xpose.msra.mxu0 0.0
        %752 = vmatprep.subr.mxu0 0.0
        %753 = vmatpush1.xpose.msra.mxu0 0.0
        %754 = vmatprep.subr.mxu0 0.0
        %755 = vmatpush1.xpose.msra.mxu0 0.0
        %756 = vmatprep.subr.mxu0 0.0
        %757 = vmatpush1.xpose.msra.mxu0 0.0
        %758 = vmatprep.subr.mxu0 0.0
        %759 = vmatpush1.xpose.msra.mxu0 0.0
        %760 = vmatprep.subr.mxu0 0.0
        %761 = vmatpush1.xpose.msra.mxu0 0.0
        %762 = vmatprep.subr.mxu0 0.0
        %763 = vmatpush1.xpose.msra.mxu0 0.0
        %764 = vmatprep.subr.mxu0 0.0
        %765 = vmatpush1.xpose.msra.mxu0 0.0
        %766 = vmatprep.subr.mxu0 0.0
        %767 = vmatpush1.xpose.msra.mxu0 0.0
        %768 = vmatprep.subr.mxu0 0.0
        %769 = vmatpush1.xpose.msra.mxu0 0.0
        %770 = vmatprep.subr.mxu0 0.0
        %771 = vmatpush1.xpose.msra.mxu0 0.0
        %772 = vmatprep.subr.mxu0 0.0
        %773 = vmatpush1.xpose.msra.mxu0 0.0
        %774 = vmatprep.subr.mxu0 0.0
        %775 = vmatpush1.xpose.msra.mxu0 0.0
        %776 = vmatprep.subr.mxu0 0.0
        %777 = vmatpush1.xpose.msra.mxu0 0.0
        %778 = vmatprep.subr.mxu0 0.0
        %779 = vmatpush1.xpose.msra.mxu0 0.0
        %780 = vmatprep.subr.mxu0 0.0
        %781 = vmatpush1.xpose.msra.mxu0 0.0
        %782 = vmatprep.subr.mxu0 0.0
        %783 = vmatpush1.xpose.msra.mxu0 0.0
        %784 = vmatprep.subr.mxu0 0.0
        %785 = vmatpush1.xpose.msra.mxu0 0.0
        %786 = vmatprep.subr.mxu0 0.0
        %787 = vmatpush1.xpose.msra.mxu0 0.0
        %788 = vmatprep.subr.mxu0 0.0
        %789 = vmatpush1.xpose.msra.mxu0 0.0
        %790 = vmatprep.subr.mxu0 0.0
        %791 = vmatpush1.xpose.msra.mxu0 0.0
        %792 = vmatprep.subr.mxu0 0.0
        %793 = vmatpush1.xpose.msra.mxu0 0.0
        %794 = vmatprep.subr.mxu0 0.0
        %795 = vmatpush1.xpose.msra.mxu0 0.0
        %796 = vmatprep.subr.mxu0 0.0
        %797 = vmatpush1.xpose.msra.mxu0 0.0
        %798 = vmatprep.subr.mxu0 0.0
        %799 = vmatpush1.xpose.msra.mxu0 0.0
        %800 = vmatprep.subr.mxu0 0.0
        %801 = vmatpush1.xpose.msra.mxu0 0.0
        %802 = vmatprep.mubr.f32.mxu0 0.0
        %803 = vmatmul.mubr.f32.gmra.mrb[0].mxu0 %v734
        %v804 = vpop.f32.mrb[0].mxu0
        %v805 = vadd.f32 0.0, %v804
        %v806 = vpop.f32.mrb[0].mxu0
        %807 = vdwg.mxu0
        %v808 = vsel %vm387, %v805, -inf
        %809 = vmax.xlane.f32.xlu0 %v808
        %v810 = vpop.xlane.xlu0 %809
        %v811 = vsub.f32 %v805, %v810
        %v812 = vmul.f32 %v811, 1.442695
        %v813 = vpow.pop %v812
        %v814 = vsel %vm387, %v813, 0.0
        %815 = vadd.xlane.f32.xlu0 %v814
        %v816 = vpop.xlane.xlu0 %815
        %v817 = vrcp.pop %v816
        %v818 = vmul.f32 %v813, %v817
        %819 = vrot.lane.b32.xlu0 %v726, 48
        %v820 = vpop.permute.xlu0 %819
        %v823 = vsel %vm387, %v818, 0
        %825 = vmatprep.subr.mxu0 0.0
        %826 = vmatpush1.msra.mxu0 %v820
        %827 = vmatprep.subr.mxu0 0.0
        %828 = vmatpush1.msra.mxu0 0.0
        %829 = vmatprep.subr.mxu0 0.0
        %830 = vmatpush1.msra.mxu0 0.0
        %831 = vmatprep.subr.mxu0 0.0
        %832 = vmatpush1.msra.mxu0 0.0
        %833 = vmatprep.subr.mxu0 0.0
        %834 = vmatpush1.msra.mxu0 0.0
        %835 = vmatprep.subr.mxu0 0.0
        %836 = vmatpush1.msra.mxu0 0.0
        %837 = vmatprep.subr.mxu0 0.0
        %838 = vmatpush1.msra.mxu0 0.0
        %839 = vmatprep.subr.mxu0 0.0
        %840 = vmatpush1.msra.mxu0 0.0
        %841 = vmatprep.subr.mxu0 0.0
        %842 = vmatpush1.msra.mxu0 0.0
        %843 = vmatprep.subr.mxu0 0.0
        %844 = vmatpush1.msra.mxu0 0.0
        %845 = vmatprep.subr.mxu0 0.0
        %846 = vmatpush1.msra.mxu0 0.0
        %847 = vmatprep.subr.mxu0 0.0
        %848 = vmatpush1.msra.mxu0 0.0
        %849 = vmatprep.subr.mxu0 0.0
        %850 = vmatpush1.msra.mxu0 0.0
        %851 = vmatprep.subr.mxu0 0.0
        %852 = vmatpush1.msra.mxu0 0.0
        %853 = vmatprep.subr.mxu0 0.0
        %854 = vmatpush1.msra.mxu0 0.0
        %855 = vmatprep.subr.mxu0 0.0
        %856 = vmatpush1.msra.mxu0 0.0
        %857 = vmatprep.subr.mxu0 0.0
        %858 = vmatpush1.msra.mxu0 0.0
        %859 = vmatprep.subr.mxu0 0.0
        %860 = vmatpush1.msra.mxu0 0.0
        %861 = vmatprep.subr.mxu0 0.0
        %862 = vmatpush1.msra.mxu0 0.0
        %863 = vmatprep.subr.mxu0 0.0
        %864 = vmatpush1.msra.mxu0 0.0
        %865 = vmatprep.subr.mxu0 0.0
        %866 = vmatpush1.msra.mxu0 0.0
        %867 = vmatprep.subr.mxu0 0.0
        %868 = vmatpush1.msra.mxu0 0.0
        %869 = vmatprep.subr.mxu0 0.0
        %870 = vmatpush1.msra.mxu0 0.0
        %871 = vmatprep.subr.mxu0 0.0
        %872 = vmatpush1.msra.mxu0 0.0
        %873 = vmatprep.subr.mxu0 0.0
        %874 = vmatpush1.msra.mxu0 0.0
        %875 = vmatprep.subr.mxu0 0.0
        %876 = vmatpush1.msra.mxu0 0.0
        %877 = vmatprep.subr.mxu0 0.0
        %878 = vmatpush1.msra.mxu0 0.0
        %879 = vmatprep.subr.mxu0 0.0
        %880 = vmatpush1.msra.mxu0 0.0
        %881 = vmatprep.subr.mxu0 0.0
        %882 = vmatpush1.msra.mxu0 0.0
        %883 = vmatprep.subr.mxu0 0.0
        %884 = vmatpush1.msra.mxu0 0.0
        %885 = vmatprep.subr.mxu0 0.0
        %886 = vmatpush1.msra.mxu0 0.0
        %887 = vmatprep.subr.mxu0 0.0
        %888 = vmatpush1.msra.mxu0 0.0
        %889 = vmatprep.mubr.f32.mxu0 0.0
        %890 = vmatmul.mubr.f32.gmra.mrb[0].mxu0 %v823
        %v891 = vpop.f32.mrb[0].mxu0
        %v892 = vadd.f32 0.0, %v891
        %v893 = vpop.f32.mrb[0].mxu0
        %894 = vdwg.mxu0
        %896 = vrot.lane.b32.xlu0 %v892, 16
        %v897 = vpop.permute.xlu0 %896
        %vm899 = vcmask 195712
        %900 = vst.msk [vmem:[#allocation3] sm:$0xff] %vm899, %v897
        %v901 = vld [vmem:[#allocation2] sm:$0xff]
        %v902 = vld [vmem:[#allocation2] sm:$0xff]
        %904 = vrot.lane.b32.xlu0 %v902, 104
        %v905 = vpop.permute.xlu0 %904
        %907 = vrot.lane.b32.xlu0 %v901, 72
        %v908 = vpop.permute.xlu0 %907
        %v909 = vsel %vm387, %v905, 0
        %v911 = vsel %vm387, %v908, 0
        %913 = vmatprep.subr.mxu0 0.0
        %914 = vmatpush1.xpose.msra.mxu0 %v911
        %915 = vmatprep.subr.mxu0 0.0
        %916 = vmatpush1.xpose.msra.mxu0 0.0
        %917 = vmatprep.subr.mxu0 0.0
        %918 = vmatpush1.xpose.msra.mxu0 0.0
        %919 = vmatprep.subr.mxu0 0.0
        %920 = vmatpush1.xpose.msra.mxu0 0.0
        %921 = vmatprep.subr.mxu0 0.0
        %922 = vmatpush1.xpose.msra.mxu0 0.0
        %923 = vmatprep.subr.mxu0 0.0
        %924 = vmatpush1.xpose.msra.mxu0 0.0
        %925 = vmatprep.subr.mxu0 0.0
        %926 = vmatpush1.xpose.msra.mxu0 0.0
        %927 = vmatprep.subr.mxu0 0.0
        %928 = vmatpush1.xpose.msra.mxu0 0.0
        %929 = vmatprep.subr.mxu0 0.0
        %930 = vmatpush1.xpose.msra.mxu0 0.0
        %931 = vmatprep.subr.mxu0 0.0
        %932 = vmatpush1.xpose.msra.mxu0 0.0
        %933 = vmatprep.subr.mxu0 0.0
        %934 = vmatpush1.xpose.msra.mxu0 0.0
        %935 = vmatprep.subr.mxu0 0.0
        %936 = vmatpush1.xpose.msra.mxu0 0.0
        %937 = vmatprep.subr.mxu0 0.0
        %938 = vmatpush1.xpose.msra.mxu0 0.0
        %939 = vmatprep.subr.mxu0 0.0
        %940 = vmatpush1.xpose.msra.mxu0 0.0
        %941 = vmatprep.subr.mxu0 0.0
        %942 = vmatpush1.xpose.msra.mxu0 0.0
        %943 = vmatprep.subr.mxu0 0.0
        %944 = vmatpush1.xpose.msra.mxu0 0.0
        %945 = vmatprep.subr.mxu0 0.0
        %946 = vmatpush1.xpose.msra.mxu0 0.0
        %947 = vmatprep.subr.mxu0 0.0
        %948 = vmatpush1.xpose.msra.mxu0 0.0
        %949 = vmatprep.subr.mxu0 0.0
        %950 = vmatpush1.xpose.msra.mxu0 0.0
        %951 = vmatprep.subr.mxu0 0.0
        %952 = vmatpush1.xpose.msra.mxu0 0.0
        %953 = vmatprep.subr.mxu0 0.0
        %954 = vmatpush1.xpose.msra.mxu0 0.0
        %955 = vmatprep.subr.mxu0 0.0
        %956 = vmatpush1.xpose.msra.mxu0 0.0
        %957 = vmatprep.subr.mxu0 0.0
        %958 = vmatpush1.xpose.msra.mxu0 0.0
        %959 = vmatprep.subr.mxu0 0.0
        %960 = vmatpush1.xpose.msra.mxu0 0.0
        %961 = vmatprep.subr.mxu0 0.0
        %962 = vmatpush1.xpose.msra.mxu0 0.0
        %963 = vmatprep.subr.mxu0 0.0
        %964 = vmatpush1.xpose.msra.mxu0 0.0
        %965 = vmatprep.subr.mxu0 0.0
        %966 = vmatpush1.xpose.msra.mxu0 0.0
        %967 = vmatprep.subr.mxu0 0.0
        %968 = vmatpush1.xpose.msra.mxu0 0.0
        %969 = vmatprep.subr.mxu0 0.0
        %970 = vmatpush1.xpose.msra.mxu0 0.0
        %971 = vmatprep.subr.mxu0 0.0
        %972 = vmatpush1.xpose.msra.mxu0 0.0
        %973 = vmatprep.subr.mxu0 0.0
        %974 = vmatpush1.xpose.msra.mxu0 0.0
        %975 = vmatprep.subr.mxu0 0.0
        %976 = vmatpush1.xpose.msra.mxu0 0.0
        %977 = vmatprep.mubr.f32.mxu0 0.0
        %978 = vmatmul.mubr.f32.gmra.mrb[0].mxu0 %v909
        %v979 = vpop.f32.mrb[0].mxu0
        %v980 = vadd.f32 0.0, %v979
        %v981 = vpop.f32.mrb[0].mxu0
        %982 = vdwg.mxu0
        %v983 = vsel %vm387, %v980, -inf
        %984 = vmax.xlane.f32.xlu0 %v983
        %v985 = vpop.xlane.xlu0 %984
        %v986 = vsub.f32 %v980, %v985
        %v987 = vmul.f32 %v986, 1.442695
        %v988 = vpow.pop %v987
        %v989 = vsel %vm387, %v988, 0.0
        %990 = vadd.xlane.f32.xlu0 %v989
        %v991 = vpop.xlane.xlu0 %990
        %v992 = vrcp.pop %v991
        %v993 = vmul.f32 %v988, %v992
        %994 = vrot.lane.b32.xlu0 %v901, 40
        %v995 = vpop.permute.xlu0 %994
        %v998 = vsel %vm387, %v993, 0
        %1000 = vmatprep.subr.mxu0 0.0
        %1001 = vmatpush1.msra.mxu0 %v995
        %1002 = vmatprep.subr.mxu0 0.0
        %1003 = vmatpush1.msra.mxu0 0.0
        %1004 = vmatprep.subr.mxu0 0.0
        %1005 = vmatpush1.msra.mxu0 0.0
        %1006 = vmatprep.subr.mxu0 0.0
        %1007 = vmatpush1.msra.mxu0 0.0
        %1008 = vmatprep.subr.mxu0 0.0
        %1009 = vmatpush1.msra.mxu0 0.0
        %1010 = vmatprep.subr.mxu0 0.0
        %1011 = vmatpush1.msra.mxu0 0.0
        %1012 = vmatprep.subr.mxu0 0.0
        %1013 = vmatpush1.msra.mxu0 0.0
        %1014 = vmatprep.subr.mxu0 0.0
        %1015 = vmatpush1.msra.mxu0 0.0
        %1016 = vmatprep.subr.mxu0 0.0
        %1017 = vmatpush1.msra.mxu0 0.0
        %1018 = vmatprep.subr.mxu0 0.0
        %1019 = vmatpush1.msra.mxu0 0.0
        %1020 = vmatprep.subr.mxu0 0.0
        %1021 = vmatpush1.msra.mxu0 0.0
        %1022 = vmatprep.subr.mxu0 0.0
        %1023 = vmatpush1.msra.mxu0 0.0
        %1024 = vmatprep.subr.mxu0 0.0
        %1025 = vmatpush1.msra.mxu0 0.0
        %1026 = vmatprep.subr.mxu0 0.0
        %1027 = vmatpush1.msra.mxu0 0.0
        %1028 = vmatprep.subr.mxu0 0.0
        %1029 = vmatpush1.msra.mxu0 0.0
        %1030 = vmatprep.subr.mxu0 0.0
        %1031 = vmatpush1.msra.mxu0 0.0
        %1032 = vmatprep.subr.mxu0 0.0
        %1033 = vmatpush1.msra.mxu0 0.0
        %1034 = vmatprep.subr.mxu0 0.0
        %1035 = vmatpush1.msra.mxu0 0.0
        %1036 = vmatprep.subr.mxu0 0.0
        %1037 = vmatpush1.msra.mxu0 0.0
        %1038 = vmatprep.subr.mxu0 0.0
        %1039 = vmatpush1.msra.mxu0 0.0
        %1040 = vmatprep.subr.mxu0 0.0
        %1041 = vmatpush1.msra.mxu0 0.0
        %1042 = vmatprep.subr.mxu0 0.0
        %1043 = vmatpush1.msra.mxu0 0.0
        %1044 = vmatprep.subr.mxu0 0.0
        %1045 = vmatpush1.msra.mxu0 0.0
        %1046 = vmatprep.subr.mxu0 0.0
        %1047 = vmatpush1.msra.mxu0 0.0
        %1048 = vmatprep.subr.mxu0 0.0
        %1049 = vmatpush1.msra.mxu0 0.0
        %1050 = vmatprep.subr.mxu0 0.0
        %1051 = vmatpush1.msra.mxu0 0.0
        %1052 = vmatprep.subr.mxu0 0.0
        %1053 = vmatpush1.msra.mxu0 0.0
        %1054 = vmatprep.subr.mxu0 0.0
        %1055 = vmatpush1.msra.mxu0 0.0
        %1056 = vmatprep.subr.mxu0 0.0
        %1057 = vmatpush1.msra.mxu0 0.0
        %1058 = vmatprep.subr.mxu0 0.0
        %1059 = vmatpush1.msra.mxu0 0.0
        %1060 = vmatprep.subr.mxu0 0.0
        %1061 = vmatpush1.msra.mxu0 0.0
        %1062 = vmatprep.subr.mxu0 0.0
        %1063 = vmatpush1.msra.mxu0 0.0
        %1064 = vmatprep.mubr.f32.mxu0 0.0
        %1065 = vmatmul.mubr.f32.gmra.mrb[0].mxu0 %v998
        %v1066 = vpop.f32.mrb[0].mxu0
        %v1067 = vadd.f32 0.0, %v1066
        %v1068 = vpop.f32.mrb[0].mxu0
        %1069 = vdwg.mxu0
        %1071 = vrot.lane.b32.xlu0 %v1067, 24
        %v1072 = vpop.permute.xlu0 %1071
        %vm1074 = vcmask 261312
        %1075 = vst.msk [vmem:[#allocation3] sm:$0xff] %vm1074, %v1072
        %v1076 = vld [vmem:[#allocation3] sm:$0xff]
        %v1077 = vld [vmem:[#allocation10] sm:$0xff]
        %v1078 = vld [vmem:[#allocation10 + $0x8] sm:$0xff]
        %v1079 = vld [vmem:[#allocation10 + $0x10] sm:$0xff]
        %v1080 = vld [vmem:[#allocation10 + $0x18] sm:$0xff]
        %v1081 = vld [vmem:[#allocation12] sm:$0x1]
        %v1083 = vlaneseq
        %v1084 = vshrl.u32 %v1083, 7
        %v1085 = vsub.s32 0, %v1084
        %v1086 = vrot.slane %v1081, %v1085
        %v1089 = vsel %vm306, %v1076, 0
        %1091 = vmatprep.subr.mxu0 0.0
        %1092 = vmatpush1.msra.mxu0 %v1077
        %1093 = vmatprep.subr.mxu0 0.0
        %1094 = vmatpush1.msra.mxu0 %v1078
        %1095 = vmatprep.subr.mxu0 0.0
        %1096 = vmatpush1.msra.mxu0 %v1079
        %1097 = vmatprep.subr.mxu0 0.0
        %1098 = vmatpush1.msra.mxu0 %v1080
        %1099 = vmatprep.subr.mxu0 0.0
        %1100 = vmatpush1.msra.mxu0 0.0
        %1101 = vmatprep.subr.mxu0 0.0
        %1102 = vmatpush1.msra.mxu0 0.0
        %1103 = vmatprep.subr.mxu0 0.0
        %1104 = vmatpush1.msra.mxu0 0.0
        %1105 = vmatprep.subr.mxu0 0.0
        %1106 = vmatpush1.msra.mxu0 0.0
        %1107 = vmatprep.subr.mxu0 0.0
        %1108 = vmatpush1.msra.mxu0 0.0
        %1109 = vmatprep.subr.mxu0 0.0
        %1110 = vmatpush1.msra.mxu0 0.0
        %1111 = vmatprep.subr.mxu0 0.0
        %1112 = vmatpush1.msra.mxu0 0.0
        %1113 = vmatprep.subr.mxu0 0.0
        %1114 = vmatpush1.msra.mxu0 0.0
        %1115 = vmatprep.subr.mxu0 0.0
        %1116 = vmatpush1.msra.mxu0 0.0
        %1117 = vmatprep.subr.mxu0 0.0
        %1118 = vmatpush1.msra.mxu0 0.0
        %1119 = vmatprep.subr.mxu0 0.0
        %1120 = vmatpush1.msra.mxu0 0.0
        %1121 = vmatprep.subr.mxu0 0.0
        %1122 = vmatpush1.msra.mxu0 0.0
        %1123 = vmatprep.subr.mxu0 0.0
        %1124 = vmatpush1.msra.mxu0 0.0
        %1125 = vmatprep.subr.mxu0 0.0
        %1126 = vmatpush1.msra.mxu0 0.0
        %1127 = vmatprep.subr.mxu0 0.0
        %1128 = vmatpush1.msra.mxu0 0.0
        %1129 = vmatprep.subr.mxu0 0.0
        %1130 = vmatpush1.msra.mxu0 0.0
        %1131 = vmatprep.subr.mxu0 0.0
        %1132 = vmatpush1.msra.mxu0 0.0
        %1133 = vmatprep.subr.mxu0 0.0
        %1134 = vmatpush1.msra.mxu0 0.0
        %1135 = vmatprep.subr.mxu0 0.0
        %1136 = vmatpush1.msra.mxu0 0.0
        %1137 = vmatprep.subr.mxu0 0.0
        %1138 = vmatpush1.msra.mxu0 0.0
        %1139 = vmatprep.subr.mxu0 0.0
        %1140 = vmatpush1.msra.mxu0 0.0
        %1141 = vmatprep.subr.mxu0 0.0
        %1142 = vmatpush1.msra.mxu0 0.0
        %1143 = vmatprep.subr.mxu0 0.0
        %1144 = vmatpush1.msra.mxu0 0.0
        %1145 = vmatprep.subr.mxu0 0.0
        %1146 = vmatpush1.msra.mxu0 0.0
        %1147 = vmatprep.subr.mxu0 0.0
        %1148 = vmatpush1.msra.mxu0 0.0
        %1149 = vmatprep.subr.mxu0 0.0
        %1150 = vmatpush1.msra.mxu0 0.0
        %1151 = vmatprep.subr.mxu0 0.0
        %1152 = vmatpush1.msra.mxu0 0.0
        %1153 = vmatprep.subr.mxu0 0.0
        %1154 = vmatpush1.msra.mxu0 0.0
        %1155 = vmatprep.mubr.f32.mxu0 0.0
        %1156 = vmatmul.mubr.f32.gmra.mrb[0].mxu0 %v1089
        %v1157 = vpop.f32.mrb[0].mxu0
        %v1158 = vadd.f32 %v1086, %v1157
        %v1159 = vpop.f32.mrb[0].mxu0
        %1160 = vdwg.mxu0
        %1161 = vst.msk [vmem:[%s293] sm:$0xff] %vm306, %v1158
        %s1162 = sand.u32 %s142, 1
        %s1163 = scalar_lea.sflag [#allocation6], %s1162
        %s1164 = sand.u32 %s142, 1
        %s1165 = smul.addr %s1164, 8
        %s1166 = scalar_lea.vmem [#allocation13], %s1165
        // Predicated region
        $region61: #{tpu_custom_call.1} parent=39 // pred_check
          %p1167 = pneg %p152
        $region62: #{tpu_custom_call.1} parent=39 // pred_check_branch
          %1169 = sbr.rel (%p1167) target = $region64
        $region63: #{tpu_custom_call.1} parent=39 // pred_region
          %s1171 = ssub.s32 128, 128
          %1172 = vsyncadd %s1163, %s1171
          %s1173 = smul.addr %s24, 128
          %s1174 = scalar_lea.hbm %s5, %s1173
          %s1176 = sshll.u32 %s1166, 4
          %s1177 = int_to_ptr.vmem [resolvable:$true] %s1176
          %1179 = dma.vmem_to_hbm [thread:$0]  %s1177, 128, %s1174, %s1163
        $region64: #{tpu_custom_call.1} parent=39 // pred_fallthru
          _
      $region40: #{tpu_custom_call.1} parent=5 // pred_fallthru
        _
      %p1180 = scmp.le.s32.totalorder 2, %s19
      // Predicated region
      $region65: #{tpu_custom_call.1} parent=5 // pred_check
        %p1181 = pneg %p1180
      $region66: #{tpu_custom_call.1} parent=5 // pred_check_branch
        %1183 = sbr.rel (%p1181) target = $region68
      $region67: #{tpu_custom_call.1} parent=5 // pred_region
        %s1184 = ssub.s32 %s19, 2
        // Predicated region
        $region69: #{tpu_custom_call.1} parent=67 // pred_check
          %p1185 = pneg %p158
        $region70: #{tpu_custom_call.1} parent=67 // pred_check_branch
          %1187 = sbr.rel (%p1185) target = $region72
        $region71: #{tpu_custom_call.1} parent=67 // pred_region
          %s1188 = sand.u32 %s143, 1
          %s1189 = scalar_lea.sflag [#allocation6], %s1188
          %s1190 = sand.u32 %s143, 1
          %s1191 = smul.addr %s1190, 8
          %s1192 = scalar_lea.vmem [#allocation13], %s1191
          %1193 = dma.done %s1189, 128
        $region72: #{tpu_custom_call.1} parent=67 // pred_fallthru
          _
      $region68: #{tpu_custom_call.1} parent=5 // pred_fallthru
        _
    $region6: #{tpu_custom_call.1} parent=1 // loop_footer
      %s23 = sadd.s32 1, %s19
    $region7: #{tpu_custom_call.1} parent=1 // loop_footer_branch
      %18 = sbr.rel target = $region3
    $region8: #{tpu_custom_call.1} parent=1 // loop_exit
      _
    %1194 = vsyncpa [#allocation5], 1
    %s1195 = scalar_lea.sflag [#allocation5], 1
    %1196 = vsyncpa %s1195, 1
    %1197 = vsyncpa [#allocation8], 1
    %1198 = vsyncpa [#allocation11], 1
    %1199 = vsyncpa [#allocation6], 1
    %s1200 = scalar_lea.sflag [#allocation6], 1
    %1201 = vsyncpa %s1200, 1

// kernel: tpu_custom_call.1
$region0: #{tpu_custom_call.1}
  #allocation0 [shape = 'u32[]', space=smem, size = 0x4, offset = 0x4, fixed_abs, tag = 'smem constant byte address 0x4 - core index']
  #allocation1 [shape = 'u32[144,128]{1,0:T(1,128)}', space=vmem, size = 0x12000, scoped, tag = 'internal scratch']
  #allocation2 [shape = 'f32[8,96]{1,0:T(8,128)}', space=vmem, size = 0x1000, scoped, tag = 'scratch operand']
  #allocation3 [shape = 'f32[8,32]{1,0:T(8,128)}', space=vmem, size = 0x1000, scoped, tag = 'scratch operand']
  %s0 = inlined_call_operand.hbm [shape: f32[2,8,32], index: 0, kind: input, shape index: {}]
  %s1 = inlined_call_operand.hbm [shape: f32[32,96], index: 1, kind: input, shape index: {}]
  %s2 = inlined_call_operand.hbm [shape: f32[1,96], index: 2, kind: input, shape index: {}]
  %s3 = inlined_call_operand.hbm [shape: f32[32,32], index: 3, kind: input, shape index: {}]
  %s4 = inlined_call_operand.hbm [shape: f32[1,32], index: 4, kind: input, shape index: {}]
  %s5 = inlined_call_operand.hbm [shape: f32[2,8,32], index: 5, kind: output, shape index: {}]
  %s6 = sld [smem:[#allocation0]]
  $region73: #{tpu_custom_call.1} parent=0
    _
  %s8 = ssub.s32 1, %s6
  %s9 = scalar_select 0, %s8, %s6
  $region1: #{tpu_custom_call.1} parent=0
    #allocation4 [shape = 'u8[8192]{0}', space=vmem, size = 0x2000, scoped, tag = 'input window, operand 0']
    #allocation5 [shape = 's32[2]{0}', space=sflag, size = 0x8, scoped, tag = 'scoped memory for tpu_custom_call.1']
    #allocation6 [shape = 's32[2]{0}', space=sflag, size = 0x8, scoped, tag = 'scoped memory for tpu_custom_call.1']
    #allocation7 [shape = 'u8[16384]{0}', space=vmem, size = 0x4000, scoped, tag = 'input window, operand 1, single buffered']
    #allocation8 [shape = 's32[1]{0}', space=sflag, size = 0x4, scoped, tag = 'scoped memory for tpu_custom_call.1']
    #allocation9 [shape = 'u8[512]{0}', space=vmem, size = 0x400, scoped, tag = 'input window, operand 2, single buffered']
    #allocation10 [shape = 'u8[16384]{0}', space=vmem, size = 0x4000, scoped, tag = 'input window, operand 3, single buffered']
    #allocation11 [shape = 's32[1]{0}', space=sflag, size = 0x4, scoped, tag = 'scoped memory for tpu_custom_call.1']
    #allocation12 [shape = 'u8[512]{0}', space=vmem, size = 0x400, scoped, tag = 'input window, operand 4, single buffered']
    #allocation13 [shape = 'u8[8192]{0}', space=vmem, size = 0x2000, scoped, tag = 'output window, operand 0']
    %10 = vsyncpa [#allocation5], 0
    %s11 = scalar_lea.sflag [#allocation5], 1
    %12 = vsyncpa %s11, 0
    %13 = vsyncpa [#allocation8], 0
    %14 = vsyncpa [#allocation11], 0
    %15 = vsyncpa [#allocation6], 0
    %s16 = scalar_lea.sflag [#allocation6], 1
    %17 = vsyncpa %s16, 0
    loop: start=0, step=1, limit=4
    $region2: #{tpu_custom_call.1} parent=1 // loop_pre_header
      _
    $region3: #{tpu_custom_call.1} parent=1 // loop_header
      %s19 = sphi 0, %s23
      %p20 = scmp.ge.s32.totalorder %s19, 4
      %s29 = sphi 0, %s31
      %s32 = sphi 0, %s29
      %s33 = sphi 0, %s32
      %s49 = sphi 0, %s33
      %s53 = sphi 0, %s53
      %s55 = sphi 0, %s53
      %s56 = sphi 0, %s55
      %s70 = sphi 0, %s56
      %s74 = sphi 0, %s74
      %s76 = sphi 0, %s74
      %s77 = sphi 0, %s76
      %s91 = sphi 0, %s77
      %s95 = sphi 0, %s95
      %s97 = sphi 0, %s95
      %s98 = sphi 0, %s97
      %s112 = sphi 0, %s98
      %s116 = sphi 0, %s116
      %s118 = sphi 0, %s116
      %s119 = sphi 0, %s118
      %s133 = sphi 0, %s119
      %s139 = sphi 0, %s141
      %s142 = sphi 0, %s139
      %s143 = sphi 0, %s142
      %s159 = sphi 0, %s143
    $region4: #{tpu_custom_call.1} parent=1 // loop_header_branch
      %22 = sbr.rel (%p20) target = $region8
    $region5: #{tpu_custom_call.1} parent=1 // loop_body
      %s24 = ssub.s32 %s19, 1
      %s25 = ssub.s32 %s19, 2
      %s26 = sadd.s32 %s19, 1
      %s27 = ssub.s32 %s19, %s26
      %p28 = scmp.eq.s32.totalorder %s27, 0
      %s30 = sadd.s32 %s29, 1
      %s31 = scalar_select %p28, %s29, %s30
      %p34 = pneg %p28
      %p35 = scmp.eq.s32.totalorder %s19, 1
      %p36 = por %p34, %p35
      %p37 = scmp.ne.s32.totalorder %s29, %s32
      %p38 = scmp.eq.s32.totalorder %s19, 0
      %p39 = por %p37, %p38
      %p40 = scmp.ne.s32.totalorder %s29, %s32
      %p41 = scmp.eq.s32.totalorder %s24, 1
      %p42 = por %p40, %p41
      %p43 = scmp.ne.s32.totalorder %s32, %s33
      %p44 = scmp.eq.s32.totalorder %s24, 0
      %p45 = por %p43, %p44
      %p46 = scmp.ne.s32.totalorder %s32, %s33
      %p47 = scmp.eq.s32.totalorder %s25, 1
      %p48 = por %p46, %p47
      %p50 = scmp.ne.s32.totalorder %s33, %s49
      %p51 = scmp.eq.s32.totalorder %s25, 0
      %p52 = por %p50, %p51
      %s54 = sadd.s32 %s53, 1
      %p57 = scmp.eq.s32.totalorder %s19, 1
      %p58 = scmp.ne.s32.totalorder %s53, %s55
      %p59 = scmp.eq.s32.totalorder %s19, 0
      %p60 = por %p58, %p59
      %p61 = scmp.ne.s32.totalorder %s53, %s55
      %p62 = scmp.eq.s32.totalorder %s24, 1
      %p63 = por %p61, %p62
      %p64 = scmp.ne.s32.totalorder %s55, %s56
      %p65 = scmp.eq.s32.totalorder %s24, 0
      %p66 = por %p64, %p65
      %p67 = scmp.ne.s32.totalorder %s55, %s56
      %p68 = scmp.eq.s32.totalorder %s25, 1
      %p69 = por %p67, %p68
      %p71 = scmp.ne.s32.totalorder %s56, %s70
      %p72 = scmp.eq.s32.totalorder %s25, 0
      %p73 = por %p71, %p72
      %s75 = sadd.s32 %s74, 1
      %p78 = scmp.eq.s32.totalorder %s19, 1
      %p79 = scmp.ne.s32.totalorder %s74, %s76
      %p80 = scmp.eq.s32.totalorder %s19, 0
      %p81 = por %p79, %p80
      %p82 = scmp.ne.s32.totalorder %s74, %s76
      %p83 = scmp.eq.s32.totalorder %s24, 1
      %p84 = por %p82, %p83
      %p85 = scmp.ne.s32.totalorder %s76, %s77
      %p86 = scmp.eq.s32.totalorder %s24, 0
      %p87 = por %p85, %p86
      %p88 = scmp.ne.s32.totalorder %s76, %s77
      %p89 = scmp.eq.s32.totalorder %s25, 1
      %p90 = por %p88, %p89
      %p92 = scmp.ne.s32.totalorder %s77, %s91
      %p93 = scmp.eq.s32.totalorder %s25, 0
      %p94 = por %p92, %p93
      %s96 = sadd.s32 %s95, 1
      %p99 = scmp.eq.s32.totalorder %s19, 1
      %p100 = scmp.ne.s32.totalorder %s95, %s97
      %p101 = scmp.eq.s32.totalorder %s19, 0
      %p102 = por %p100, %p101
      %p103 = scmp.ne.s32.totalorder %s95, %s97
      %p104 = scmp.eq.s32.totalorder %s24, 1
      %p105 = por %p103, %p104
      %p106 = scmp.ne.s32.totalorder %s97, %s98
      %p107 = scmp.eq.s32.totalorder %s24, 0
      %p108 = por %p106, %p107
      %p109 = scmp.ne.s32.totalorder %s97, %s98
      %p110 = scmp.eq.s32.totalorder %s25, 1
      %p111 = por %p109, %p110
      %p113 = scmp.ne.s32.totalorder %s98, %s112
      %p114 = scmp.eq.s32.totalorder %s25, 0
      %p115 = por %p113, %p114
      %s117 = sadd.s32 %s116, 1
      %p120 = scmp.eq.s32.totalorder %s19, 1
      %p121 = scmp.ne.s32.totalorder %s116, %s118
      %p122 = scmp.eq.s32.totalorder %s19, 0
      %p123 = por %p121, %p122
      %p124 = scmp.ne.s32.totalorder %s116, %s118
      %p125 = scmp.eq.s32.totalorder %s24, 1
      %p126 = por %p124, %p125
      %p127 = scmp.ne.s32.totalorder %s118, %s119
      %p128 = scmp.eq.s32.totalorder %s24, 0
      %p129 = por %p127, %p128
      %p130 = scmp.ne.s32.totalorder %s118, %s119
      %p131 = scmp.eq.s32.totalorder %s25, 1
      %p132 = por %p130, %p131
      %p134 = scmp.ne.s32.totalorder %s119, %s133
      %p135 = scmp.eq.s32.totalorder %s25, 0
      %p136 = por %p134, %p135
      %s137 = ssub.s32 %s19, %s26
      %p138 = scmp.eq.s32.totalorder %s137, 0
      %s140 = sadd.s32 %s139, 1
      %s141 = scalar_select %p138, %s139, %s140
      %p144 = pneg %p138
      %p145 = scmp.eq.s32.totalorder %s19, 1
      %p146 = por %p144, %p145
      %p147 = scmp.ne.s32.totalorder %s139, %s142
      %p148 = scmp.eq.s32.totalorder %s19, 0
      %p149 = por %p147, %p148
      %p150 = scmp.ne.s32.totalorder %s139, %s142
      %p151 = scmp.eq.s32.totalorder %s24, 1
      %p152 = por %p150, %p151
      %p153 = scmp.ne.s32.totalorder %s142, %s143
      %p154 = scmp.eq.s32.totalorder %s24, 0
      %p155 = por %p153, %p154
      %p156 = scmp.ne.s32.totalorder %s142, %s143
      %p157 = scmp.eq.s32.totalorder %s25, 1
      %p158 = por %p156, %p157
      %p160 = scmp.ne.s32.totalorder %s143, %s159
      %p161 = scmp.eq.s32.totalorder %s25, 0
      %p162 = por %p160, %p161
      %p163 = scmp.le.s32.totalorder 1, %s19
      %p164 = scmp.lt.s32.totalorder %s19, 3
      %p165 = pnand %p163, %p164
      %p166 = pneg %p165
      // Predicated region
      $region9: #{tpu_custom_call.1} parent=5 // pred_check
        _
      $region10: #{tpu_custom_call.1} parent=5 // pred_check_branch
        %168 = sbr.rel (%p165) target = $region12
      $region11: #{tpu_custom_call.1} parent=5 // pred_region
        %s169 = ssub.s32 %s19, 1
        // Predicated region
        $region13: #{tpu_custom_call.1} parent=11 // pred_check
          %p170 = pneg %p66
        $region14: #{tpu_custom_call.1} parent=11 // pred_check_branch
          %172 = sbr.rel (%p170) target = $region16
        $region15: #{tpu_custom_call.1} parent=11 // pred_region
          %s174 = ssub.s32 512, 512
          %175 = vsyncadd [#allocation8], %s174
          %s176 = sshll.u32 [#allocation7], 4
          %s177 = int_to_ptr.vmem [resolvable:$true] %s176
          %182 = dma.hbm_to_vmem [thread:$0]  %s1, 512, %s177, [#allocation8], 128, 128, 8
        $region16: #{tpu_custom_call.1} parent=11 // pred_fallthru
          _
        // Predicated region
        $region17: #{tpu_custom_call.1} parent=11 // pred_check
          %p183 = pneg %p87
        $region18: #{tpu_custom_call.1} parent=11 // pred_check_branch
          %185 = sbr.rel (%p183) target = $region20
        $region19: #{tpu_custom_call.1} parent=11 // pred_region
          %s187 = ssub.s32 16, 16
          %188 = vsyncadd [#allocation8], %s187
          %s190 = sshll.u32 [#allocation9], 4
          %s191 = int_to_ptr.vmem [resolvable:$true] %s190
          %193 = dma.hbm_to_vmem [thread:$0]  %s2, 16, %s191, [#allocation8]
        $region20: #{tpu_custom_call.1} parent=11 // pred_fallthru
          _
        // Predicated region
        $region21: #{tpu_custom_call.1} parent=11 // pred_check
          %p194 = pneg %p108
        $region22: #{tpu_custom_call.1} parent=11 // pred_check_branch
          %196 = sbr.rel (%p194) target = $region24
        $region23: #{tpu_custom_call.1} parent=11 // pred_region
          %s198 = ssub.s32 512, 512
          %199 = vsyncadd [#allocation11], %s198
          %s200 = sshll.u32 [#allocation10], 4
          %s201 = int_to_ptr.vmem [resolvable:$true] %s200
          %206 = dma.hbm_to_vmem [thread:$0]  %s3, 512, %s201, [#allocation11], 128, 128, 8
        $region24: #{tpu_custom_call.1} parent=11 // pred_fallthru
          _
        // Predicated region
        $region25: #{tpu_custom_call.1} parent=11 // pred_check
          %p207 = pneg %p129
        $region26: #{tpu_custom_call.1} parent=11 // pred_check_branch
          %209 = sbr.rel (%p207) target = $region28
        $region27: #{tpu_custom_call.1} parent=11 // pred_region
          %s211 = ssub.s32 16, 16
          %212 = vsyncadd [#allocation11], %s211
          %s214 = sshll.u32 [#allocation12], 4
          %s215 = int_to_ptr.vmem [resolvable:$true] %s214
          %217 = dma.hbm_to_vmem [thread:$0]  %s4, 16, %s215, [#allocation11]
        $region28: #{tpu_custom_call.1} parent=11 // pred_fallthru
          _
      $region12: #{tpu_custom_call.1} parent=5 // pred_fallthru
        _
      %p218 = scmp.lt.s32.totalorder %s19, 2
      // Predicated region
      $region29: #{tpu_custom_call.1} parent=5 // pred_check
        %p219 = pneg %p218
      $region30: #{tpu_custom_call.1} parent=5 // pred_check_branch
        %221 = sbr.rel (%p219) target = $region32
      $region31: #{tpu_custom_call.1} parent=5 // pred_region
        // Predicated region
        $region33: #{tpu_custom_call.1} parent=31 // pred_check
          %p222 = pneg %p39
        $region34: #{tpu_custom_call.1} parent=31 // pred_check_branch
          %224 = sbr.rel (%p222) target = $region36
        $region35: #{tpu_custom_call.1} parent=31 // pred_region
          %s225 = sand.u32 %s29, 1
          %s226 = scalar_lea.sflag [#allocation5], %s225
          %s227 = sand.u32 %s29, 1
          %s228 = smul.addr %s227, 8
          %s229 = scalar_lea.vmem [#allocation4], %s228
          %s231 = ssub.s32 128, 128
          %232 = vsyncadd %s226, %s231
          %s233 = smul.addr %s19, 128
          %s234 = scalar_lea.hbm %s0, %s233
          %s236 = sshll.u32 %s229, 4
          %s237 = int_to_ptr.vmem [resolvable:$true] %s236
          %239 = dma.hbm_to_vmem [thread:$0]  %s234, 128, %s237, %s226
        $region36: #{tpu_custom_call.1} parent=31 // pred_fallthru
          _
      $region32: #{tpu_custom_call.1} parent=5 // pred_fallthru
        _
      %p240 = scmp.le.s32.totalorder 1, %s19
      %p241 = scmp.lt.s32.totalorder %s19, 3
      %p242 = pnand %p240, %p241
      %p243 = pneg %p242
      // Predicated region
      $region37: #{tpu_custom_call.1} parent=5 // pred_check
        _
      $region38: #{tpu_custom_call.1} parent=5 // pred_check_branch
        %245 = sbr.rel (%p242) target = $region40
      $region39: #{tpu_custom_call.1} parent=5 // pred_region
        %s246 = ssub.s32 %s19, 1
        %s247 = sand.u32 %s32, 1
        %s248 = scalar_lea.sflag [#allocation5], %s247
        %s249 = sand.u32 %s32, 1
        %s250 = smul.addr %s249, 8
        %s251 = scalar_lea.vmem [#allocation4], %s250
        // Predicated region
        $region41: #{tpu_custom_call.1} parent=39 // pred_check
          %p252 = pneg %p45
        $region42: #{tpu_custom_call.1} parent=39 // pred_check_branch
          %254 = sbr.rel (%p252) target = $region44
        $region43: #{tpu_custom_call.1} parent=39 // pred_region
          %255 = dma.done %s248, 128
        $region44: #{tpu_custom_call.1} parent=39 // pred_fallthru
          _
        // Predicated region
        $region45: #{tpu_custom_call.1} parent=39 // pred_check
          %p256 = pneg %p66
        $region46: #{tpu_custom_call.1} parent=39 // pred_check_branch
          %258 = sbr.rel (%p256) target = $region48
        $region47: #{tpu_custom_call.1} parent=39 // pred_region
          %259 = dma.done [#allocation8], 512
        $region48: #{tpu_custom_call.1} parent=39 // pred_fallthru
          _
        // Predicated region
        $region49: #{tpu_custom_call.1} parent=39 // pred_check
          %p260 = pneg %p87
        $region50: #{tpu_custom_call.1} parent=39 // pred_check_branch
          %262 = sbr.rel (%p260) target = $region52
        $region51: #{tpu_custom_call.1} parent=39 // pred_region
          %263 = dma.done [#allocation8], 16
        $region52: #{tpu_custom_call.1} parent=39 // pred_fallthru
          _
        // Predicated region
        $region53: #{tpu_custom_call.1} parent=39 // pred_check
          %p264 = pneg %p108
        $region54: #{tpu_custom_call.1} parent=39 // pred_check_branch
          %266 = sbr.rel (%p264) target = $region56
        $region55: #{tpu_custom_call.1} parent=39 // pred_region
          %267 = dma.done [#allocation11], 512
        $region56: #{tpu_custom_call.1} parent=39 // pred_fallthru
          _
        // Predicated region
        $region57: #{tpu_custom_call.1} parent=39 // pred_check
          %p268 = pneg %p129
        $region58: #{tpu_custom_call.1} parent=39 // pred_check_branch
          %270 = sbr.rel (%p268) target = $region60
        $region59: #{tpu_custom_call.1} parent=39 // pred_region
          %271 = dma.done [#allocation11], 16
        $region60: #{tpu_custom_call.1} parent=39 // pred_fallthru
          _
        %s272 = sand.u32 %s32, 1
        %s273 = scalar_lea.sflag [#allocation5], %s272
        %s274 = sand.u32 %s32, 1
        %s275 = smul.addr %s274, 8
        %s276 = scalar_lea.vmem [#allocation4], %s275
        %p277 = pneg %p45
        %p278 = pneg %p42
        %p279 = pneg %p66
        %p280 = pneg %p63
        %p281 = pneg %p87
        %p282 = pneg %p84
        %p283 = pneg %p108
        %p284 = pneg %p105
        %p285 = pneg %p129
        %p286 = pneg %p126
        %p287 = pneg %p155
        %p288 = pneg %p152
        %s289 = sand.u32 %s142, 1
        %s290 = scalar_lea.sflag [#allocation6], %s289
        %s291 = sand.u32 %s142, 1
        %s292 = smul.addr %s291, 8
        %s293 = scalar_lea.vmem [#allocation13], %s292
        %v294 = vld [vmem:[%s251] sm:$0xff]
        %v295 = vld [vmem:[#allocation7] sm:$0xff]
        %v296 = vld [vmem:[#allocation7 + $0x8] sm:$0xff]
        %v297 = vld [vmem:[#allocation7 + $0x10] sm:$0xff]
        %v298 = vld [vmem:[#allocation7 + $0x18] sm:$0xff]
        %v299 = vld [vmem:[#allocation9] sm:$0x1]
        %v301 = vlaneseq
        %v302 = vshrl.u32 %v301, 7
        %v303 = vsub.s32 0, %v302
        %v304 = vrot.slane %v299, %v303
        %vm306 = vcmask 261120
        %v308 = vsel %vm306, %v294, 0
        %310 = vmatprep.subr.mxu0 0.0
        %311 = vmatpush1.msra.mxu0 %v295
        %312 = vmatprep.subr.mxu0 0.0
        %313 = vmatpush1.msra.mxu0 %v296
        %314 = vmatprep.subr.mxu0 0.0
        %315 = vmatpush1.msra.mxu0 %v297
        %316 = vmatprep.subr.mxu0 0.0
        %317 = vmatpush1.msra.mxu0 %v298
        %318 = vmatprep.subr.mxu0 0.0
        %319 = vmatpush1.msra.mxu0 0.0
        %320 = vmatprep.subr.mxu0 0.0
        %321 = vmatpush1.msra.mxu0 0.0
        %322 = vmatprep.subr.mxu0 0.0
        %323 = vmatpush1.msra.mxu0 0.0
        %324 = vmatprep.subr.mxu0 0.0
        %325 = vmatpush1.msra.mxu0 0.0
        %326 = vmatprep.subr.mxu0 0.0
        %327 = vmatpush1.msra.mxu0 0.0
        %328 = vmatprep.subr.mxu0 0.0
        %329 = vmatpush1.msra.mxu0 0.0
        %330 = vmatprep.subr.mxu0 0.0
        %331 = vmatpush1.msra.mxu0 0.0
        %332 = vmatprep.subr.mxu0 0.0
        %333 = vmatpush1.msra.mxu0 0.0
        %334 = vmatprep.subr.mxu0 0.0
        %335 = vmatpush1.msra.mxu0 0.0
        %336 = vmatprep.subr.mxu0 0.0
        %337 = vmatpush1.msra.mxu0 0.0
        %338 = vmatprep.subr.mxu0 0.0
        %339 = vmatpush1.msra.mxu0 0.0
        %340 = vmatprep.subr.mxu0 0.0
        %341 = vmatpush1.msra.mxu0 0.0
        %342 = vmatprep.subr.mxu0 0.0
        %343 = vmatpush1.msra.mxu0 0.0
        %344 = vmatprep.subr.mxu0 0.0
        %345 = vmatpush1.msra.mxu0 0.0
        %346 = vmatprep.subr.mxu0 0.0
        %347 = vmatpush1.msra.mxu0 0.0
        %348 = vmatprep.subr.mxu0 0.0
        %349 = vmatpush1.msra.mxu0 0.0
        %350 = vmatprep.subr.mxu0 0.0
        %351 = vmatpush1.msra.mxu0 0.0
        %352 = vmatprep.subr.mxu0 0.0
        %353 = vmatpush1.msra.mxu0 0.0
        %354 = vmatprep.subr.mxu0 0.0
        %355 = vmatpush1.msra.mxu0 0.0
        %356 = vmatprep.subr.mxu0 0.0
        %357 = vmatpush1.msra.mxu0 0.0
        %358 = vmatprep.subr.mxu0 0.0
        %359 = vmatpush1.msra.mxu0 0.0
        %360 = vmatprep.subr.mxu0 0.0
        %361 = vmatpush1.msra.mxu0 0.0
        %362 = vmatprep.subr.mxu0 0.0
        %363 = vmatpush1.msra.mxu0 0.0
        %364 = vmatprep.subr.mxu0 0.0
        %365 = vmatpush1.msra.mxu0 0.0
        %366 = vmatprep.subr.mxu0 0.0
        %367 = vmatpush1.msra.mxu0 0.0
        %368 = vmatprep.subr.mxu0 0.0
        %369 = vmatpush1.msra.mxu0 0.0
        %370 = vmatprep.subr.mxu0 0.0
        %371 = vmatpush1.msra.mxu0 0.0
        %372 = vmatprep.subr.mxu0 0.0
        %373 = vmatpush1.msra.mxu0 0.0
        %374 = vmatprep.mubr.f32.mxu0 0.0
        %375 = vmatmul.mubr.f32.gmra.mrb[0].mxu0 %v308
        %v376 = vpop.f32.mrb[0].mxu0
        %v377 = vadd.f32 %v304, %v376
        %v378 = vpop.f32.mrb[0].mxu0
        %379 = vdwg.mxu0
        %vm380 = vcmask 785408
        %381 = vst.msk [vmem:[#allocation2] sm:$0xff] %vm380, %v377
        %v382 = vld [vmem:[#allocation2] sm:$0xff]
        %v383 = vld [vmem:[#allocation2] sm:$0xff]
        %385 = vrot.lane.b32.xlu0 %v382, 96
        %v386 = vpop.permute.xlu0 %385
        %vm387 = vcmask 64512
        %v389 = vsel %vm387, %v383, 0
        %v391 = vsel %vm387, %v386, 0
        %393 = vmatprep.subr.mxu0 0.0
        %394 = vmatpush1.xpose.msra.mxu0 %v391
        %395 = vmatprep.subr.mxu0 0.0
        %396 = vmatpush1.xpose.msra.mxu0 0.0
        %397 = vmatprep.subr.mxu0 0.0
        %398 = vmatpush1.xpose.msra.mxu0 0.0
        %399 = vmatprep.subr.mxu0 0.0
        %400 = vmatpush1.xpose.msra.mxu0 0.0
        %401 = vmatprep.subr.mxu0 0.0
        %402 = vmatpush1.xpose.msra.mxu0 0.0
        %403 = vmatprep.subr.mxu0 0.0
        %404 = vmatpush1.xpose.msra.mxu0 0.0
        %405 = vmatprep.subr.mxu0 0.0
        %406 = vmatpush1.xpose.msra.mxu0 0.0
        %407 = vmatprep.subr.mxu0 0.0
        %408 = vmatpush1.xpose.msra.mxu0 0.0
        %409 = vmatprep.subr.mxu0 0.0
        %410 = vmatpush1.xpose.msra.mxu0 0.0
        %411 = vmatprep.subr.mxu0 0.0
        %412 = vmatpush1.xpose.msra.mxu0 0.0
        %413 = vmatprep.subr.mxu0 0.0
        %414 = vmatpush1.xpose.msra.mxu0 0.0
        %415 = vmatprep.subr.mxu0 0.0
        %416 = vmatpush1.xpose.msra.mxu0 0.0
        %417 = vmatprep.subr.mxu0 0.0
        %418 = vmatpush1.xpose.msra.mxu0 0.0
        %419 = vmatprep.subr.mxu0 0.0
        %420 = vmatpush1.xpose.msra.mxu0 0.0
        %421 = vmatprep.subr.mxu0 0.0
        %422 = vmatpush1.xpose.msra.mxu0 0.0
        %423 = vmatprep.subr.mxu0 0.0
        %424 = vmatpush1.xpose.msra.mxu0 0.0
        %425 = vmatprep.subr.mxu0 0.0
        %426 = vmatpush1.xpose.msra.mxu0 0.0
        %427 = vmatprep.subr.mxu0 0.0
        %428 = vmatpush1.xpose.msra.mxu0 0.0
        %429 = vmatprep.subr.mxu0 0.0
        %430 = vmatpush1.xpose.msra.mxu0 0.0
        %431 = vmatprep.subr.mxu0 0.0
        %432 = vmatpush1.xpose.msra.mxu0 0.0
        %433 = vmatprep.subr.mxu0 0.0
        %434 = vmatpush1.xpose.msra.mxu0 0.0
        %435 = vmatprep.subr.mxu0 0.0
        %436 = vmatpush1.xpose.msra.mxu0 0.0
        %437 = vmatprep.subr.mxu0 0.0
        %438 = vmatpush1.xpose.msra.mxu0 0.0
        %439 = vmatprep.subr.mxu0 0.0
        %440 = vmatpush1.xpose.msra.mxu0 0.0
        %441 = vmatprep.subr.mxu0 0.0
        %442 = vmatpush1.xpose.msra.mxu0 0.0
        %443 = vmatprep.subr.mxu0 0.0
        %444 = vmatpush1.xpose.msra.mxu0 0.0
        %445 = vmatprep.subr.mxu0 0.0
        %446 = vmatpush1.xpose.msra.mxu0 0.0
        %447 = vmatprep.subr.mxu0 0.0
        %448 = vmatpush1.xpose.msra.mxu0 0.0
        %449 = vmatprep.subr.mxu0 0.0
        %450 = vmatpush1.xpose.msra.mxu0 0.0
        %451 = vmatprep.subr.mxu0 0.0
        %452 = vmatpush1.xpose.msra.mxu0 0.0
        %453 = vmatprep.subr.mxu0 0.0
        %454 = vmatpush1.xpose.msra.mxu0 0.0
        %455 = vmatprep.subr.mxu0 0.0
        %456 = vmatpush1.xpose.msra.mxu0 0.0
        %457 = vmatprep.mubr.f32.mxu0 0.0
        %458 = vmatmul.mubr.f32.gmra.mrb[0].mxu0 %v389
        %v459 = vpop.f32.mrb[0].mxu0
        %v460 = vadd.f32 0.0, %v459
        %v461 = vpop.f32.mrb[0].mxu0
        %462 = vdwg.mxu0
        %v463 = vsel %vm387, %v460, -inf
        %464 = vmax.xlane.f32.xlu0 %v463
        %v465 = vpop.xlane.xlu0 %464
        %v466 = vsub.f32 %v460, %v465
        %v467 = vmul.f32 %v466, 1.442695
        %v468 = vpow.pop %v467
        %v469 = vsel %vm387, %v468, 0.0
        %470 = vadd.xlane.f32.xlu0 %v469
        %v471 = vpop.xlane.xlu0 %470
        %v472 = vrcp.pop %v471
        %v473 = vmul.f32 %v468, %v472
        %474 = vrot.lane.b32.xlu0 %v382, 64
        %v475 = vpop.permute.xlu0 %474
        %v478 = vsel %vm387, %v473, 0
        %480 = vmatprep.subr.mxu0 0.0
        %481 = vmatpush1.msra.mxu0 %v475
        %482 = vmatprep.subr.mxu0 0.0
        %483 = vmatpush1.msra.mxu0 0.0
        %484 = vmatprep.subr.mxu0 0.0
        %485 = vmatpush1.msra.mxu0 0.0
        %486 = vmatprep.subr.mxu0 0.0
        %487 = vmatpush1.msra.mxu0 0.0
        %488 = vmatprep.subr.mxu0 0.0
        %489 = vmatpush1.msra.mxu0 0.0
        %490 = vmatprep.subr.mxu0 0.0
        %491 = vmatpush1.msra.mxu0 0.0
        %492 = vmatprep.subr.mxu0 0.0
        %493 = vmatpush1.msra.mxu0 0.0
        %494 = vmatprep.subr.mxu0 0.0
        %495 = vmatpush1.msra.mxu0 0.0
        %496 = vmatprep.subr.mxu0 0.0
        %497 = vmatpush1.msra.mxu0 0.0
        %498 = vmatprep.subr.mxu0 0.0
        %499 = vmatpush1.msra.mxu0 0.0
        %500 = vmatprep.subr.mxu0 0.0
        %501 = vmatpush1.msra.mxu0 0.0
        %502 = vmatprep.subr.mxu0 0.0
        %503 = vmatpush1.msra.mxu0 0.0
        %504 = vmatprep.subr.mxu0 0.0
        %505 = vmatpush1.msra.mxu0 0.0
        %506 = vmatprep.subr.mxu0 0.0
        %507 = vmatpush1.msra.mxu0 0.0
        %508 = vmatprep.subr.mxu0 0.0
        %509 = vmatpush1.msra.mxu0 0.0
        %510 = vmatprep.subr.mxu0 0.0
        %511 = vmatpush1.msra.mxu0 0.0
        %512 = vmatprep.subr.mxu0 0.0
        %513 = vmatpush1.msra.mxu0 0.0
        %514 = vmatprep.subr.mxu0 0.0
        %515 = vmatpush1.msra.mxu0 0.0
        %516 = vmatprep.subr.mxu0 0.0
        %517 = vmatpush1.msra.mxu0 0.0
        %518 = vmatprep.subr.mxu0 0.0
        %519 = vmatpush1.msra.mxu0 0.0
        %520 = vmatprep.subr.mxu0 0.0
        %521 = vmatpush1.msra.mxu0 0.0
        %522 = vmatprep.subr.mxu0 0.0
        %523 = vmatpush1.msra.mxu0 0.0
        %524 = vmatprep.subr.mxu0 0.0
        %525 = vmatpush1.msra.mxu0 0.0
        %526 = vmatprep.subr.mxu0 0.0
        %527 = vmatpush1.msra.mxu0 0.0
        %528 = vmatprep.subr.mxu0 0.0
        %529 = vmatpush1.msra.mxu0 0.0
        %530 = vmatprep.subr.mxu0 0.0
        %531 = vmatpush1.msra.mxu0 0.0
        %532 = vmatprep.subr.mxu0 0.0
        %533 = vmatpush1.msra.mxu0 0.0
        %534 = vmatprep.subr.mxu0 0.0
        %535 = vmatpush1.msra.mxu0 0.0
        %536 = vmatprep.subr.mxu0 0.0
        %537 = vmatpush1.msra.mxu0 0.0
        %538 = vmatprep.subr.mxu0 0.0
        %539 = vmatpush1.msra.mxu0 0.0
        %540 = vmatprep.subr.mxu0 0.0
        %541 = vmatpush1.msra.mxu0 0.0
        %542 = vmatprep.subr.mxu0 0.0
        %543 = vmatpush1.msra.mxu0 0.0
        %544 = vmatprep.mubr.f32.mxu0 0.0
        %545 = vmatmul.mubr.f32.gmra.mrb[0].mxu0 %v478
        %v546 = vpop.f32.mrb[0].mxu0
        %v547 = vadd.f32 0.0, %v546
        %v548 = vpop.f32.mrb[0].mxu0
        %549 = vdwg.mxu0
        %550 = vst.msk [vmem:[#allocation3] sm:$0xff] %vm387, %v547
        %v551 = vld [vmem:[#allocation2] sm:$0xff]
        %v552 = vld [vmem:[#allocation2] sm:$0xff]
        %554 = vrot.lane.b32.xlu0 %v552, 120
        %v555 = vpop.permute.xlu0 %554
        %557 = vrot.lane.b32.xlu0 %v551, 88
        %v558 = vpop.permute.xlu0 %557
        %v559 = vsel %vm387, %v555, 0
        %v561 = vsel %vm387, %v558, 0
        %563 = vmatprep.subr.mxu0 0.0
        %564 = vmatpush1.xpose.msra.mxu0 %v561
        %565 = vmatprep.subr.mxu0 0.0
        %566 = vmatpush1.xpose.msra.mxu0 0.0
        %567 = vmatprep.subr.mxu0 0.0
        %568 = vmatpush1.xpose.msra.mxu0 0.0
        %569 = vmatprep.subr.mxu0 0.0
        %570 = vmatpush1.xpose.msra.mxu0 0.0
        %571 = vmatprep.subr.mxu0 0.0
        %572 = vmatpush1.xpose.msra.mxu0 0.0
        %573 = vmatprep.subr.mxu0 0.0
        %574 = vmatpush1.xpose.msra.mxu0 0.0
        %575 = vmatprep.subr.mxu0 0.0
        %576 = vmatpush1.xpose.msra.mxu0 0.0
        %577 = vmatprep.subr.mxu0 0.0
        %578 = vmatpush1.xpose.msra.mxu0 0.0
        %579 = vmatprep.subr.mxu0 0.0
        %580 = vmatpush1.xpose.msra.mxu0 0.0
        %581 = vmatprep.subr.mxu0 0.0
        %582 = vmatpush1.xpose.msra.mxu0 0.0
        %583 = vmatprep.subr.mxu0 0.0
        %584 = vmatpush1.xpose.msra.mxu0 0.0
        %585 = vmatprep.subr.mxu0 0.0
        %586 = vmatpush1.xpose.msra.mxu0 0.0
        %587 = vmatprep.subr.mxu0 0.0
        %588 = vmatpush1.xpose.msra.mxu0 0.0
        %589 = vmatprep.subr.mxu0 0.0
        %590 = vmatpush1.xpose.msra.mxu0 0.0
        %591 = vmatprep.subr.mxu0 0.0
        %592 = vmatpush1.xpose.msra.mxu0 0.0
        %593 = vmatprep.subr.mxu0 0.0
        %594 = vmatpush1.xpose.msra.mxu0 0.0
        %595 = vmatprep.subr.mxu0 0.0
        %596 = vmatpush1.xpose.msra.mxu0 0.0
        %597 = vmatprep.subr.mxu0 0.0
        %598 = vmatpush1.xpose.msra.mxu0 0.0
        %599 = vmatprep.subr.mxu0 0.0
        %600 = vmatpush1.xpose.msra.mxu0 0.0
        %601 = vmatprep.subr.mxu0 0.0
        %602 = vmatpush1.xpose.msra.mxu0 0.0
        %603 = vmatprep.subr.mxu0 0.0
        %604 = vmatpush1.xpose.msra.mxu0 0.0
        %605 = vmatprep.subr.mxu0 0.0
        %606 = vmatpush1.xpose.msra.mxu0 0.0
        %607 = vmatprep.subr.mxu0 0.0
        %608 = vmatpush1.xpose.msra.mxu0 0.0
        %609 = vmatprep.subr.mxu0 0.0
        %610 = vmatpush1.xpose.msra.mxu0 0.0
        %611 = vmatprep.subr.mxu0 0.0
        %612 = vmatpush1.xpose.msra.mxu0 0.0
        %613 = vmatprep.subr.mxu0 0.0
        %614 = vmatpush1.xpose.msra.mxu0 0.0
        %615 = vmatprep.subr.mxu0 0.0
        %616 = vmatpush1.xpose.msra.mxu0 0.0
        %617 = vmatprep.subr.mxu0 0.0
        %618 = vmatpush1.xpose.msra.mxu0 0.0
        %619 = vmatprep.subr.mxu0 0.0
        %620 = vmatpush1.xpose.msra.mxu0 0.0
        %621 = vmatprep.subr.mxu0 0.0
        %622 = vmatpush1.xpose.msra.mxu0 0.0
        %623 = vmatprep.subr.mxu0 0.0
        %624 = vmatpush1.xpose.msra.mxu0 0.0
        %625 = vmatprep.subr.mxu0 0.0
        %626 = vmatpush1.xpose.msra.mxu0 0.0
        %627 = vmatprep.mubr.f32.mxu0 0.0
        %628 = vmatmul.mubr.f32.gmra.mrb[0].mxu0 %v559
        %v629 = vpop.f32.mrb[0].mxu0
        %v630 = vadd.f32 0.0, %v629
        %v631 = vpop.f32.mrb[0].mxu0
        %632 = vdwg.mxu0
        %v633 = vsel %vm387, %v630, -inf
        %634 = vmax.xlane.f32.xlu0 %v633
        %v635 = vpop.xlane.xlu0 %634
        %v636 = vsub.f32 %v630, %v635
        %v637 = vmul.f32 %v636, 1.442695
        %v638 = vpow.pop %v637
        %v639 = vsel %vm387, %v638, 0.0
        %640 = vadd.xlane.f32.xlu0 %v639
        %v641 = vpop.xlane.xlu0 %640
        %v642 = vrcp.pop %v641
        %v643 = vmul.f32 %v638, %v642
        %644 = vrot.lane.b32.xlu0 %v551, 56
        %v645 = vpop.permute.xlu0 %644
        %v648 = vsel %vm387, %v643, 0
        %650 = vmatprep.subr.mxu0 0.0
        %651 = vmatpush1.msra.mxu0 %v645
        %652 = vmatprep.subr.mxu0 0.0
        %653 = vmatpush1.msra.mxu0 0.0
        %654 = vmatprep.subr.mxu0 0.0
        %655 = vmatpush1.msra.mxu0 0.0
        %656 = vmatprep.subr.mxu0 0.0
        %657 = vmatpush1.msra.mxu0 0.0
        %658 = vmatprep.subr.mxu0 0.0
        %659 = vmatpush1.msra.mxu0 0.0
        %660 = vmatprep.subr.mxu0 0.0
        %661 = vmatpush1.msra.mxu0 0.0
        %662 = vmatprep.subr.mxu0 0.0
        %663 = vmatpush1.msra.mxu0 0.0
        %664 = vmatprep.subr.mxu0 0.0
        %665 = vmatpush1.msra.mxu0 0.0
        %666 = vmatprep.subr.mxu0 0.0
        %667 = vmatpush1.msra.mxu0 0.0
        %668 = vmatprep.subr.mxu0 0.0
        %669 = vmatpush1.msra.mxu0 0.0
        %670 = vmatprep.subr.mxu0 0.0
        %671 = vmatpush1.msra.mxu0 0.0
        %672 = vmatprep.subr.mxu0 0.0
        %673 = vmatpush1.msra.mxu0 0.0
        %674 = vmatprep.subr.mxu0 0.0
        %675 = vmatpush1.msra.mxu0 0.0
        %676 = vmatprep.subr.mxu0 0.0
        %677 = vmatpush1.msra.mxu0 0.0
        %678 = vmatprep.subr.mxu0 0.0
        %679 = vmatpush1.msra.mxu0 0.0
        %680 = vmatprep.subr.mxu0 0.0
        %681 = vmatpush1.msra.mxu0 0.0
        %682 = vmatprep.subr.mxu0 0.0
        %683 = vmatpush1.msra.mxu0 0.0
        %684 = vmatprep.subr.mxu0 0.0
        %685 = vmatpush1.msra.mxu0 0.0
        %686 = vmatprep.subr.mxu0 0.0
        %687 = vmatpush1.msra.mxu0 0.0
        %688 = vmatprep.subr.mxu0 0.0
        %689 = vmatpush1.msra.mxu0 0.0
        %690 = vmatprep.subr.mxu0 0.0
        %691 = vmatpush1.msra.mxu0 0.0
        %692 = vmatprep.subr.mxu0 0.0
        %693 = vmatpush1.msra.mxu0 0.0
        %694 = vmatprep.subr.mxu0 0.0
        %695 = vmatpush1.msra.mxu0 0.0
        %696 = vmatprep.subr.mxu0 0.0
        %697 = vmatpush1.msra.mxu0 0.0
        %698 = vmatprep.subr.mxu0 0.0
        %699 = vmatpush1.msra.mxu0 0.0
        %700 = vmatprep.subr.mxu0 0.0
        %701 = vmatpush1.msra.mxu0 0.0
        %702 = vmatprep.subr.mxu0 0.0
        %703 = vmatpush1.msra.mxu0 0.0
        %704 = vmatprep.subr.mxu0 0.0
        %705 = vmatpush1.msra.mxu0 0.0
        %706 = vmatprep.subr.mxu0 0.0
        %707 = vmatpush1.msra.mxu0 0.0
        %708 = vmatprep.subr.mxu0 0.0
        %709 = vmatpush1.msra.mxu0 0.0
        %710 = vmatprep.subr.mxu0 0.0
        %711 = vmatpush1.msra.mxu0 0.0
        %712 = vmatprep.subr.mxu0 0.0
        %713 = vmatpush1.msra.mxu0 0.0
        %714 = vmatprep.mubr.f32.mxu0 0.0
        %715 = vmatmul.mubr.f32.gmra.mrb[0].mxu0 %v648
        %v716 = vpop.f32.mrb[0].mxu0
        %v717 = vadd.f32 0.0, %v716
        %v718 = vpop.f32.mrb[0].mxu0
        %719 = vdwg.mxu0
        %721 = vrot.lane.b32.xlu0 %v717, 8
        %v722 = vpop.permute.xlu0 %721
        %vm724 = vcmask 130112
        %725 = vst.msk [vmem:[#allocation3] sm:$0xff] %vm724, %v722
        %v726 = vld [vmem:[#allocation2] sm:$0xff]
        %v727 = vld [vmem:[#allocation2] sm:$0xff]
        %729 = vrot.lane.b32.xlu0 %v727, 112
        %v730 = vpop.permute.xlu0 %729
        %732 = vrot.lane.b32.xlu0 %v726, 80
        %v733 = vpop.permute.xlu0 %732
        %v734 = vsel %vm387, %v730, 0
        %v736 = vsel %vm387, %v733, 0
        %738 = vmatprep.subr.mxu0 0.0
        %739 = vmatpush1.xpose.msra.mxu0 %v736
        %740 = vmatprep.subr.mxu0 0.0
        %741 = vmatpush1.xpose.msra.mxu0 0.0
        %742 = vmatprep.subr.mxu0 0.0
        %743 = vmatpush1.xpose.msra.mxu0 0.0
        %744 = vmatprep.subr.mxu0 0.0
        %745 = vmatpush1.xpose.msra.mxu0 0.0
        %746 = vmatprep.subr.mxu0 0.0
        %747 = vmatpush1.xpose.msra.mxu0 0.0
        %748 = vmatprep.subr.mxu0 0.0
        %749 = vmatpush1.xpose.msra.mxu0 0.0
        %750 = vmatprep.subr.mxu0 0.0
        %751 = vmatpush1.xpose.msra.mxu0 0.0
        %752 = vmatprep.subr.mxu0 0.0
        %753 = vmatpush1.xpose.msra.mxu0 0.0
        %754 = vmatprep.subr.mxu0 0.0
        %755 = vmatpush1.xpose.msra.mxu0 0.0
        %756 = vmatprep.subr.mxu0 0.0
        %757 = vmatpush1.xpose.msra.mxu0 0.0
        %758 = vmatprep.subr.mxu0 0.0
        %759 = vmatpush1.xpose.msra.mxu0 0.0
        %760 = vmatprep.subr.mxu0 0.0
        %761 = vmatpush1.xpose.msra.mxu0 0.0
        %762 = vmatprep.subr.mxu0 0.0
        %763 = vmatpush1.xpose.msra.mxu0 0.0
        %764 = vmatprep.subr.mxu0 0.0
        %765 = vmatpush1.xpose.msra.mxu0 0.0
        %766 = vmatprep.subr.mxu0 0.0
        %767 = vmatpush1.xpose.msra.mxu0 0.0
        %768 = vmatprep.subr.mxu0 0.0
        %769 = vmatpush1.xpose.msra.mxu0 0.0
        %770 = vmatprep.subr.mxu0 0.0
        %771 = vmatpush1.xpose.msra.mxu0 0.0
        %772 = vmatprep.subr.mxu0 0.0
        %773 = vmatpush1.xpose.msra.mxu0 0.0
        %774 = vmatprep.subr.mxu0 0.0
        %775 = vmatpush1.xpose.msra.mxu0 0.0
        %776 = vmatprep.subr.mxu0 0.0
        %777 = vmatpush1.xpose.msra.mxu0 0.0
        %778 = vmatprep.subr.mxu0 0.0
        %779 = vmatpush1.xpose.msra.mxu0 0.0
        %780 = vmatprep.subr.mxu0 0.0
        %781 = vmatpush1.xpose.msra.mxu0 0.0
        %782 = vmatprep.subr.mxu0 0.0
        %783 = vmatpush1.xpose.msra.mxu0 0.0
        %784 = vmatprep.subr.mxu0 0.0
        %785 = vmatpush1.xpose.msra.mxu0 0.0
        %786 = vmatprep.subr.mxu0 0.0
        %787 = vmatpush1.xpose.msra.mxu0 0.0
        %788 = vmatprep.subr.mxu0 0.0
        %789 = vmatpush1.xpose.msra.mxu0 0.0
        %790 = vmatprep.subr.mxu0 0.0
        %791 = vmatpush1.xpose.msra.mxu0 0.0
        %792 = vmatprep.subr.mxu0 0.0
        %793 = vmatpush1.xpose.msra.mxu0 0.0
        %794 = vmatprep.subr.mxu0 0.0
        %795 = vmatpush1.xpose.msra.mxu0 0.0
        %796 = vmatprep.subr.mxu0 0.0
        %797 = vmatpush1.xpose.msra.mxu0 0.0
        %798 = vmatprep.subr.mxu0 0.0
        %799 = vmatpush1.xpose.msra.mxu0 0.0
        %800 = vmatprep.subr.mxu0 0.0
        %801 = vmatpush1.xpose.msra.mxu0 0.0
        %802 = vmatprep.mubr.f32.mxu0 0.0
        %803 = vmatmul.mubr.f32.gmra.mrb[0].mxu0 %v734
        %v804 = vpop.f32.mrb[0].mxu0
        %v805 = vadd.f32 0.0, %v804
        %v806 = vpop.f32.mrb[0].mxu0
        %807 = vdwg.mxu0
        %v808 = vsel %vm387, %v805, -inf
        %809 = vmax.xlane.f32.xlu0 %v808
        %v810 = vpop.xlane.xlu0 %809
        %v811 = vsub.f32 %v805, %v810
        %v812 = vmul.f32 %v811, 1.442695
        %v813 = vpow.pop %v812
        %v814 = vsel %vm387, %v813, 0.0
        %815 = vadd.xlane.f32.xlu0 %v814
        %v816 = vpop.xlane.xlu0 %815
        %v817 = vrcp.pop %v816
        %v818 = vmul.f32 %v813, %v817
        %819 = vrot.lane.b32.xlu0 %v726, 48
        %v820 = vpop.permute.xlu0 %819
        %v823 = vsel %vm387, %v818, 0
        %825 = vmatprep.subr.mxu0 0.0
        %826 = vmatpush1.msra.mxu0 %v820
        %827 = vmatprep.subr.mxu0 0.0
        %828 = vmatpush1.msra.mxu0 0.0
        %829 = vmatprep.subr.mxu0 0.0
        %830 = vmatpush1.msra.mxu0 0.0
        %831 = vmatprep.subr.mxu0 0.0
        %832 = vmatpush1.msra.mxu0 0.0
        %833 = vmatprep.subr.mxu0 0.0
        %834 = vmatpush1.msra.mxu0 0.0
        %835 = vmatprep.subr.mxu0 0.0
        %836 = vmatpush1.msra.mxu0 0.0
        %837 = vmatprep.subr.mxu0 0.0
        %838 = vmatpush1.msra.mxu0 0.0
        %839 = vmatprep.subr.mxu0 0.0
        %840 = vmatpush1.msra.mxu0 0.0
        %841 = vmatprep.subr.mxu0 0.0
        %842 = vmatpush1.msra.mxu0 0.0
        %843 = vmatprep.subr.mxu0 0.0
        %844 = vmatpush1.msra.mxu0 0.0
        %845 = vmatprep.subr.mxu0 0.0
        %846 = vmatpush1.msra.mxu0 0.0
        %847 = vmatprep.subr.mxu0 0.0
        %848 = vmatpush1.msra.mxu0 0.0
        %849 = vmatprep.subr.mxu0 0.0
        %850 = vmatpush1.msra.mxu0 0.0
        %851 = vmatprep.subr.mxu0 0.0
        %852 = vmatpush1.msra.mxu0 0.0
        %853 = vmatprep.subr.mxu0 0.0
        %854 = vmatpush1.msra.mxu0 0.0
        %855 = vmatprep.subr.mxu0 0.0
        %856 = vmatpush1.msra.mxu0 0.0
        %857 = vmatprep.subr.mxu0 0.0
        %858 = vmatpush1.msra.mxu0 0.0
        %859 = vmatprep.subr.mxu0 0.0
        %860 = vmatpush1.msra.mxu0 0.0
        %861 = vmatprep.subr.mxu0 0.0
        %862 = vmatpush1.msra.mxu0 0.0
        %863 = vmatprep.subr.mxu0 0.0
        %864 = vmatpush1.msra.mxu0 0.0
        %865 = vmatprep.subr.mxu0 0.0
        %866 = vmatpush1.msra.mxu0 0.0
        %867 = vmatprep.subr.mxu0 0.0
        %868 = vmatpush1.msra.mxu0 0.0
        %869 = vmatprep.subr.mxu0 0.0
        %870 = vmatpush1.msra.mxu0 0.0
        %871 = vmatprep.subr.mxu0 0.0
        %872 = vmatpush1.msra.mxu0 0.0
        %873 = vmatprep.subr.mxu0 0.0
        %874 = vmatpush1.msra.mxu0 0.0
        %875 = vmatprep.subr.mxu0 0.0
        %876 = vmatpush1.msra.mxu0 0.0
        %877 = vmatprep.subr.mxu0 0.0
        %878 = vmatpush1.msra.mxu0 0.0
        %879 = vmatprep.subr.mxu0 0.0
        %880 = vmatpush1.msra.mxu0 0.0
        %881 = vmatprep.subr.mxu0 0.0
        %882 = vmatpush1.msra.mxu0 0.0
        %883 = vmatprep.subr.mxu0 0.0
        %884 = vmatpush1.msra.mxu0 0.0
        %885 = vmatprep.subr.mxu0 0.0
        %886 = vmatpush1.msra.mxu0 0.0
        %887 = vmatprep.subr.mxu0 0.0
        %888 = vmatpush1.msra.mxu0 0.0
        %889 = vmatprep.mubr.f32.mxu0 0.0
        %890 = vmatmul.mubr.f32.gmra.mrb[0].mxu0 %v823
        %v891 = vpop.f32.mrb[0].mxu0
        %v892 = vadd.f32 0.0, %v891
        %v893 = vpop.f32.mrb[0].mxu0
        %894 = vdwg.mxu0
        %896 = vrot.lane.b32.xlu0 %v892, 16
        %v897 = vpop.permute.xlu0 %896
        %vm899 = vcmask 195712
        %900 = vst.msk [vmem:[#allocation3] sm:$0xff] %vm899, %v897
        %v901 = vld [vmem:[#allocation2] sm:$0xff]
        %v902 = vld [vmem:[#allocation2] sm:$0xff]
        %904 = vrot.lane.b32.xlu0 %v902, 104
        %v905 = vpop.permute.xlu0 %904
        %907 = vrot.lane.b32.xlu0 %v901, 72
        %v908 = vpop.permute.xlu0 %907
        %v909 = vsel %vm387, %v905, 0
        %v911 = vsel %vm387, %v908, 0
        %913 = vmatprep.subr.mxu0 0.0
        %914 = vmatpush1.xpose.msra.mxu0 %v911
        %915 = vmatprep.subr.mxu0 0.0
        %916 = vmatpush1.xpose.msra.mxu0 0.0
        %917 = vmatprep.subr.mxu0 0.0
        %918 = vmatpush1.xpose.msra.mxu0 0.0
        %919 = vmatprep.subr.mxu0 0.0
        %920 = vmatpush1.xpose.msra.mxu0 0.0
        %921 = vmatprep.subr.mxu0 0.0
        %922 = vmatpush1.xpose.msra.mxu0 0.0
        %923 = vmatprep.subr.mxu0 0.0
        %924 = vmatpush1.xpose.msra.mxu0 0.0
        %925 = vmatprep.subr.mxu0 0.0
        %926 = vmatpush1.xpose.msra.mxu0 0.0
        %927 = vmatprep.subr.mxu0 0.0
        %928 = vmatpush1.xpose.msra.mxu0 0.0
        %929 = vmatprep.subr.mxu0 0.0
        %930 = vmatpush1.xpose.msra.mxu0 0.0
        %931 = vmatprep.subr.mxu0 0.0
        %932 = vmatpush1.xpose.msra.mxu0 0.0
        %933 = vmatprep.subr.mxu0 0.0
        %934 = vmatpush1.xpose.msra.mxu0 0.0
        %935 = vmatprep.subr.mxu0 0.0
        %936 = vmatpush1.xpose.msra.mxu0 0.0
        %937 = vmatprep.subr.mxu0 0.0
        %938 = vmatpush1.xpose.msra.mxu0 0.0
        %939 = vmatprep.subr.mxu0 0.0
        %940 = vmatpush1.xpose.msra.mxu0 0.0
        %941 = vmatprep.subr.mxu0 0.0
        %942 = vmatpush1.xpose.msra.mxu0 0.0
        %943 = vmatprep.subr.mxu0 0.0
        %944 = vmatpush1.xpose.msra.mxu0 0.0
        %945 = vmatprep.subr.mxu0 0.0
        %946 = vmatpush1.xpose.msra.mxu0 0.0
        %947 = vmatprep.subr.mxu0 0.0
        %948 = vmatpush1.xpose.msra.mxu0 0.0
        %949 = vmatprep.subr.mxu0 0.0
        %950 = vmatpush1.xpose.msra.mxu0 0.0
        %951 = vmatprep.subr.mxu0 0.0
        %952 = vmatpush1.xpose.msra.mxu0 0.0
        %953 = vmatprep.subr.mxu0 0.0
        %954 = vmatpush1.xpose.msra.mxu0 0.0
        %955 = vmatprep.subr.mxu0 0.0
        %956 = vmatpush1.xpose.msra.mxu0 0.0
        %957 = vmatprep.subr.mxu0 0.0
        %958 = vmatpush1.xpose.msra.mxu0 0.0
        %959 = vmatprep.subr.mxu0 0.0
        %960 = vmatpush1.xpose.msra.mxu0 0.0
        %961 = vmatprep.subr.mxu0 0.0
        %962 = vmatpush1.xpose.msra.mxu0 0.0
        %963 = vmatprep.subr.mxu0 0.0
        %964 = vmatpush1.xpose.msra.mxu0 0.0
        %965 = vmatprep.subr.mxu0 0.0
        %966 = vmatpush1.xpose.msra.mxu0 0.0
        %967 = vmatprep.subr.mxu0 0.0
        %968 = vmatpush1.xpose.msra.mxu0 0.0
        %969 = vmatprep.subr.mxu0 0.0
        %970 = vmatpush1.xpose.msra.mxu0 0.0
        %971 = vmatprep.subr.mxu0 0.0
        %972 = vmatpush1.xpose.msra.mxu0 0.0
        %973 = vmatprep.subr.mxu0 0.0
        %974 = vmatpush1.xpose.msra.mxu0 0.0
        %975 = vmatprep.subr.mxu0 0.0
        %976 = vmatpush1.xpose.msra.mxu0 0.0
        %977 = vmatprep.mubr.f32.mxu0 0.0
        %978 = vmatmul.mubr.f32.gmra.mrb[0].mxu0 %v909
        %v979 = vpop.f32.mrb[0].mxu0
        %v980 = vadd.f32 0.0, %v979
        %v981 = vpop.f32.mrb[0].mxu0
        %982 = vdwg.mxu0
        %v983 = vsel %vm387, %v980, -inf
        %984 = vmax.xlane.f32.xlu0 %v983
        %v985 = vpop.xlane.xlu0 %984
        %v986 = vsub.f32 %v980, %v985
        %v987 = vmul.f32 %v986, 1.442695
        %v988 = vpow.pop %v987
        %v989 = vsel %vm387, %v988, 0.0
        %990 = vadd.xlane.f32.xlu0 %v989
        %v991 = vpop.xlane.xlu0 %990
        %v992 = vrcp.pop %v991
        %v993 = vmul.f32 %v988, %v992
        %994 = vrot.lane.b32.xlu0 %v901, 40
        %v995 = vpop.permute.xlu0 %994
        %v998 = vsel %vm387, %v993, 0
        %1000 = vmatprep.subr.mxu0 0.0
        %1001 = vmatpush1.msra.mxu0 %v995
        %1002 = vmatprep.subr.mxu0 0.0
        %1003 = vmatpush1.msra.mxu0 0.0
        %1004 = vmatprep.subr.mxu0 0.0
        %1005 = vmatpush1.msra.mxu0 0.0
        %1006 = vmatprep.subr.mxu0 0.0
        %1007 = vmatpush1.msra.mxu0 0.0
        %1008 = vmatprep.subr.mxu0 0.0
        %1009 = vmatpush1.msra.mxu0 0.0
        %1010 = vmatprep.subr.mxu0 0.0
        %1011 = vmatpush1.msra.mxu0 0.0
        %1012 = vmatprep.subr.mxu0 0.0
        %1013 = vmatpush1.msra.mxu0 0.0
        %1014 = vmatprep.subr.mxu0 0.0
        %1015 = vmatpush1.msra.mxu0 0.0
        %1016 = vmatprep.subr.mxu0 0.0
        %1017 = vmatpush1.msra.mxu0 0.0
        %1018 = vmatprep.subr.mxu0 0.0
        %1019 = vmatpush1.msra.mxu0 0.0
        %1020 = vmatprep.subr.mxu0 0.0
        %1021 = vmatpush1.msra.mxu0 0.0
        %1022 = vmatprep.subr.mxu0 0.0
        %1023 = vmatpush1.msra.mxu0 0.0
        %1024 = vmatprep.subr.mxu0 0.0
        %1025 = vmatpush1.msra.mxu0 0.0
        %1026 = vmatprep.subr.mxu0 0.0
        %1027 = vmatpush1.msra.mxu0 0.0
        %1028 = vmatprep.subr.mxu0 0.0
        %1029 = vmatpush1.msra.mxu0 0.0
        %1030 = vmatprep.subr.mxu0 0.0
        %1031 = vmatpush1.msra.mxu0 0.0
        %1032 = vmatprep.subr.mxu0 0.0
        %1033 = vmatpush1.msra.mxu0 0.0
        %1034 = vmatprep.subr.mxu0 0.0
        %1035 = vmatpush1.msra.mxu0 0.0
        %1036 = vmatprep.subr.mxu0 0.0
        %1037 = vmatpush1.msra.mxu0 0.0
        %1038 = vmatprep.subr.mxu0 0.0
        %1039 = vmatpush1.msra.mxu0 0.0
        %1040 = vmatprep.subr.mxu0 0.0
        %1041 = vmatpush1.msra.mxu0 0.0
        %1042 = vmatprep.subr.mxu0 0.0
        %1043 = vmatpush1.msra.mxu0 0.0
        %1044 = vmatprep.subr.mxu0 0.0
        %1045 = vmatpush1.msra.mxu0 0.0
        %1046 = vmatprep.subr.mxu0 0.0
        %1047 = vmatpush1.msra.mxu0 0.0
        %1048 = vmatprep.subr.mxu0 0.0
        %1049 = vmatpush1.msra.mxu0 0.0
        %1050 = vmatprep.subr.mxu0 0.0
        %1051 = vmatpush1.msra.mxu0 0.0
        %1052 = vmatprep.subr.mxu0 0.0
        %1053 = vmatpush1.msra.mxu0 0.0
        %1054 = vmatprep.subr.mxu0 0.0
        %1055 = vmatpush1.msra.mxu0 0.0
        %1056 = vmatprep.subr.mxu0 0.0
        %1057 = vmatpush1.msra.mxu0 0.0
        %1058 = vmatprep.subr.mxu0 0.0
        %1059 = vmatpush1.msra.mxu0 0.0
        %1060 = vmatprep.subr.mxu0 0.0
        %1061 = vmatpush1.msra.mxu0 0.0
        %1062 = vmatprep.subr.mxu0 0.0
        %1063 = vmatpush1.msra.mxu0 0.0
        %1064 = vmatprep.mubr.f32.mxu0 0.0
        %1065 = vmatmul.mubr.f32.gmra.mrb[0].mxu0 %v998
        %v1066 = vpop.f32.mrb[0].mxu0
        %v1067 = vadd.f32 0.0, %v1066
        %v1068 = vpop.f32.mrb[0].mxu0
        %1069 = vdwg.mxu0
        %1071 = vrot.lane.b32.xlu0 %v1067, 24
        %v1072 = vpop.permute.xlu0 %1071
        %vm1074 = vcmask 261312
        %1075 = vst.msk [vmem:[#allocation3] sm:$0xff] %vm1074, %v1072
        %v1076 = vld [vmem:[#allocation3] sm:$0xff]
        %v1077 = vld [vmem:[#allocation10] sm:$0xff]
        %v1078 = vld [vmem:[#allocation10 + $0x8] sm:$0xff]
        %v1079 = vld [vmem:[#allocation10 + $0x10] sm:$0xff]
        %v1080 = vld [vmem:[#allocation10 + $0x18] sm:$0xff]
        %v1081 = vld [vmem:[#allocation12] sm:$0x1]
        %v1083 = vlaneseq
        %v1084 = vshrl.u32 %v1083, 7
        %v1085 = vsub.s32 0, %v1084
        %v1086 = vrot.slane %v1081, %v1085
        %v1089 = vsel %vm306, %v1076, 0
        %1091 = vmatprep.subr.mxu0 0.0
        %1092 = vmatpush1.msra.mxu0 %v1077
        %1093 = vmatprep.subr.mxu0 0.0
        %1094 = vmatpush1.msra.mxu0 %v1078
        %1095 = vmatprep.subr.mxu0 0.0
        %1096 = vmatpush1.msra.mxu0 %v1079
        %1097 = vmatprep.subr.mxu0 0.0
        %1098 = vmatpush1.msra.mxu0 %v1080
        %1099 = vmatprep.subr.mxu0 0.0
        %1100 = vmatpush1.msra.mxu0 0.0
        %1101 = vmatprep.subr.mxu0 0.0
        %1102 = vmatpush1.msra.mxu0 0.0
        %1103 = vmatprep.subr.mxu0 0.0
        %1104 = vmatpush1.msra.mxu0 0.0
        %1105 = vmatprep.subr.mxu0 0.0
        %1106 = vmatpush1.msra.mxu0 0.0
        %1107 = vmatprep.subr.mxu0 0.0
        %1108 = vmatpush1.msra.mxu0 0.0
        %1109 = vmatprep.subr.mxu0 0.0
        %1110 = vmatpush1.msra.mxu0 0.0
        %1111 = vmatprep.subr.mxu0 0.0
        %1112 = vmatpush1.msra.mxu0 0.0
        %1113 = vmatprep.subr.mxu0 0.0
        %1114 = vmatpush1.msra.mxu0 0.0
        %1115 = vmatprep.subr.mxu0 0.0
        %1116 = vmatpush1.msra.mxu0 0.0
        %1117 = vmatprep.subr.mxu0 0.0
        %1118 = vmatpush1.msra.mxu0 0.0
        %1119 = vmatprep.subr.mxu0 0.0
        %1120 = vmatpush1.msra.mxu0 0.0
        %1121 = vmatprep.subr.mxu0 0.0
        %1122 = vmatpush1.msra.mxu0 0.0
        %1123 = vmatprep.subr.mxu0 0.0
        %1124 = vmatpush1.msra.mxu0 0.0
        %1125 = vmatprep.subr.mxu0 0.0
        %1126 = vmatpush1.msra.mxu0 0.0
        %1127 = vmatprep.subr.mxu0 0.0
        %1128 = vmatpush1.msra.mxu0 0.0
        %1129 = vmatprep.subr.mxu0 0.0
        %1130 = vmatpush1.msra.mxu0 0.0
        %1131 = vmatprep.subr.mxu0 0.0
        %1132 = vmatpush1.msra.mxu0 0.0
        %1133 = vmatprep.subr.mxu0 0.0
        %1134 = vmatpush1.msra.mxu0 0.0
        %1135 = vmatprep.subr.mxu0 0.0
        %1136 = vmatpush1.msra.mxu0 0.0
        %1137 = vmatprep.subr.mxu0 0.0
        %1138 = vmatpush1.msra.mxu0 0.0
        %1139 = vmatprep.subr.mxu0 0.0
        %1140 = vmatpush1.msra.mxu0 0.0
        %1141 = vmatprep.subr.mxu0 0.0
        %1142 = vmatpush1.msra.mxu0 0.0
        %1143 = vmatprep.subr.mxu0 0.0
        %1144 = vmatpush1.msra.mxu0 0.0
        %1145 = vmatprep.subr.mxu0 0.0
        %1146 = vmatpush1.msra.mxu0 0.0
        %1147 = vmatprep.subr.mxu0 0.0
        %1148 = vmatpush1.msra.mxu0 0.0
        %1149 = vmatprep.subr.mxu0 0.0
        %1150 = vmatpush1.msra.mxu0 0.0
        %1151 = vmatprep.subr.mxu0 0.0
        %1152 = vmatpush1.msra.mxu0 0.0
        %1153 = vmatprep.subr.mxu0 0.0
        %1154 = vmatpush1.msra.mxu0 0.0
        %1155 = vmatprep.mubr.f32.mxu0 0.0
        %1156 = vmatmul.mubr.f32.gmra.mrb[0].mxu0 %v1089
        %v1157 = vpop.f32.mrb[0].mxu0
        %v1158 = vadd.f32 %v1086, %v1157
        %v1159 = vpop.f32.mrb[0].mxu0
        %1160 = vdwg.mxu0
        %1161 = vst.msk [vmem:[%s293] sm:$0xff] %vm306, %v1158
        %s1162 = sand.u32 %s142, 1
        %s1163 = scalar_lea.sflag [#allocation6], %s1162
        %s1164 = sand.u32 %s142, 1
        %s1165 = smul.addr %s1164, 8
        %s1166 = scalar_lea.vmem [#allocation13], %s1165
        // Predicated region
        $region61: #{tpu_custom_call.1} parent=39 // pred_check
          %p1167 = pneg %p152
        $region62: #{tpu_custom_call.1} parent=39 // pred_check_branch
          %1169 = sbr.rel (%p1167) target = $region64
        $region63: #{tpu_custom_call.1} parent=39 // pred_region
          %s1171 = ssub.s32 128, 128
          %1172 = vsyncadd %s1163, %s1171
          %s1173 = smul.addr %s24, 128
          %s1174 = scalar_lea.hbm %s5, %s1173
          %s1176 = sshll.u32 %s1166, 4
          %s1177 = int_to_ptr.vmem [resolvable:$true] %s1176
          %1179 = dma.vmem_to_hbm [thread:$0]  %s1177, 128, %s1174, %s1163
        $region64: #{tpu_custom_call.1} parent=39 // pred_fallthru
          _
      $region40: #{tpu_custom_call.1} parent=5 // pred_fallthru
        _
      %p1180 = scmp.le.s32.totalorder 2, %s19
      // Predicated region
      $region65: #{tpu_custom_call.1} parent=5 // pred_check
        %p1181 = pneg %p1180
      $region66: #{tpu_custom_call.1} parent=5 // pred_check_branch
        %1183 = sbr.rel (%p1181) target = $region68
      $region67: #{tpu_custom_call.1} parent=5 // pred_region
        %s1184 = ssub.s32 %s19, 2
        // Predicated region
        $region69: #{tpu_custom_call.1} parent=67 // pred_check
          %p1185 = pneg %p158
        $region70: #{tpu_custom_call.1} parent=67 // pred_check_branch
          %1187 = sbr.rel (%p1185) target = $region72
        $region71: #{tpu_custom_call.1} parent=67 // pred_region
          %s1188 = sand.u32 %s143, 1
          %s1189 = scalar_lea.sflag [#allocation6], %s1188
          %s1190 = sand.u32 %s143, 1
          %s1191 = smul.addr %s1190, 8
          %s1192 = scalar_lea.vmem [#allocation13], %s1191
          %1193 = dma.done %s1189, 128
        $region72: #{tpu_custom_call.1} parent=67 // pred_fallthru
          _
      $region68: #{tpu_custom_call.1} parent=5 // pred_fallthru
        _
    $region6: #{tpu_custom_call.1} parent=1 // loop_footer
      %s23 = sadd.s32 1, %s19
    $region7: #{tpu_custom_call.1} parent=1 // loop_footer_branch
      %18 = sbr.rel target = $region3
    $region8: #{tpu_custom_call.1} parent=1 // loop_exit
      _
    %1194 = vsyncpa [#allocation5], 1
    %s1195 = scalar_lea.sflag [#allocation5], 1
    %1196 = vsyncpa %s1195, 1
    %1197 = vsyncpa [#allocation8], 1
    %1198 = vsyncpa [#allocation11], 1
    %1199 = vsyncpa [#allocation6], 1
    %s1200 = scalar_lea.sflag [#allocation6], 1
    %1201 = vsyncpa %s1200, 1

</llo_original>
